<compile_context>
chip_gen: v7x
topology: tpu7x:2x2x1
jax: 0.10.0
libtpu: 0.0.40
codegen_flags: <defaults>
</compile_context>

<pallas_src>
import functools

import numpy as np
import jax
import jax.numpy as jnp
from jax import lax
from jax.experimental import pallas as pl
from jax.experimental.pallas import tpu as pltpu


# ----------------------------------- kernel ----------------------------------
def _rep_upsample_kernel(x_ref, w_ref, b_ref, rw_ref, cw_ref, o_ref, *,
                         mxu_precision):
    # x_ref : (1, H+2, W+2, C)  zero-padded NHWC input, full frame (resident)
    # w_ref : (4C, 4C)          fused ConvT taps; row blocks = shifted views
    #                           [(0,0),(0,1),(1,0),(1,1)], col blocks = output
    #                           parities [00, 01, 10, 11]
    # b_ref : (1, 1, 2C)        fused bias, duplicated for the two col parities
    # rw_ref: (H, 1, 4)         bilinear row weights (resident, sliced per tile)
    # cw_ref: (1, W, 4)         bilinear col weights (resident)
    # o_ref : (1, tH, 2, W, 2C) output: o[0,i,p,j,q*C+c] = y[2i+p, 2j+q, c]
    tH = o_ref.shape[1]
    W = o_ref.shape[3]
    C = x_ref.shape[3]
    toff = pl.program_id(1) * tH

    # Row-shifted slabs in the storage dtype, loaded once and shared by the
    # conv and bilinear paths (no f32 round-trip on the MXU operands).
    xm1 = x_ref[0, pl.ds(toff + 0, tH), :, :]    # rows i-1 (padded indexing)
    x0 = x_ref[0, pl.ds(toff + 1, tH), :, :]     # rows i
    xp1 = x_ref[0, pl.ds(toff + 2, tH), :, :]    # rows i+1

    # --- transposed conv: ONE fused MXU matmul for all four output parities --
    xcat = jnp.concatenate(
        [x0[:, 1:W + 1, :], x0[:, 2:W + 2, :],
         xp1[:, 1:W + 1, :], xp1[:, 2:W + 2, :]], axis=-1)           # (tH, W, 4C)
    conv = jnp.dot(xcat.reshape(tH * W, 4 * C), w_ref[...],
                   preferred_element_type=jnp.float32,
                   precision=mxu_precision)
    conv = conv.reshape(tH, W, 4 * C)     # lane blocks: [p00 | p01 | p10 | p11]

    # --- bilinear x2 (align_corners=True): separable row pass then col pass --
    # f32 VPU math; storage-dtype slabs are upcast once where needed.
    rw = rw_ref[pl.ds(toff, tH), :, :]     # (tH, 1, 4) f32
    cw = cw_ref[...]                       # (1,  W, 4) f32
    x0f = x0.astype(jnp.float32)
    v0 = rw[:, :, 0:1] * xm1.astype(jnp.float32) + rw[:, :, 1:2] * x0f
    v1 = rw[:, :, 2:3] * x0f + rw[:, :, 3:4] * xp1.astype(jnp.float32)

    def hpass(v):   # -> (tH, W, 2C), channel blocks [q=0 | q=1]
        u0 = cw[:, :, 0:1] * v[:, 0:W, :] + cw[:, :, 1:2] * v[:, 1:W + 1, :]
        u1 = cw[:, :, 2:3] * v[:, 1:W + 1, :] + cw[:, :, 3:4] * v[:, 2:W + 2, :]
        return jnp.concatenate([u0, u1], axis=-1)

    bias = b_ref[...]                      # (1, 1, 2C) f32

    o_ref[0, :, 0, :, :] = jnp.maximum(
        conv[:, :, 0:2 * C] + hpass(v0) + bias, 0.0).astype(o_ref.dtype)
    o_ref[0, :, 1, :, :] = jnp.maximum(
        conv[:, :, 2 * C:4 * C] + hpass(v1) + bias, 0.0).astype(o_ref.dtype)


# ------------------------------- host helpers ---------------------------------
def _parity_weights(L):
    # bilinear, scale 2, align_corners=True (output length 2L):
    #   even rows 2i  : w = i/(2L-1)     on x[i-1],  1 - i/(2L-1)   on x[i]
    #   odd  rows 2i+1: w = (L+i)/(2L-1) on x[i],    (L-1-i)/(2L-1) on x[i+1]
    # Border taps (x[-1], x[L]) have exactly-zero weight -> zero halo is exact.
    idx = jnp.arange(L, dtype=jnp.float32)
    d = float(2 * L - 1)
    return jnp.stack([
        jnp.stack([idx / d, 1.0 - idx / d]),              # parity 0: taps (-1, 0)
        jnp.stack([(L + idx) / d, (L - 1.0 - idx) / d]),  # parity 1: taps (0, +1)
    ])                                                    # (parity, tap, L)


def _vmem_capacity_bytes():
    """Per-core VMEM capacity (generation aware); conservative fallback."""
    try:
        info = pltpu.get_tpu_info()
        cap = getattr(info, "vmem_capacity_bytes", None)
        if cap:
            return int(cap)
    except Exception:
        pass
    return 64 * 2 ** 20           # v7x per-TensorCore VMEM (smallest generation)


def _pick_row_tile(H, W, C, in_itemsize, out_itemsize, budget_bytes):
    """Row tile tH (divisor of H): biggest tile fitting the VMEM budget while
    keeping >=4 pipeline steps per batch element."""
    frame = 2 * (H + 2) * (W + 2) * C * in_itemsize        # resident frame (2 bufs)
    consts = 2 * (16 * C * C * in_itemsize                 # fused ConvT weight
                  + 2 * C * 4                              # bias
                  + H * 8 * 128 * 4                        # row weights (padded tiles)
                  + pl.cdiv(W, 8) * 8 * 128 * 4)           # col weights (padded tiles)

    def step_bytes(th):
        out_blk = 2 * th * 2 * W * 2 * C * out_itemsize    # output tile (2 bufs)
        scratch = th * (W + 2) * C * (8 * in_itemsize + 20 * 4)   # in-kernel temps (est.)
        return frame + consts + out_blk + scratch

    divisors = sorted((d for d in range(1, H + 1) if H % d == 0), reverse=True)
    fitting = [d for d in divisors if step_bytes(d) <= budget_bytes]
    if not fitting:
        # TODO(synk): tile W / manual halo DMA when even tH=1 (or the resident
        # padded frame itself) exceeds the per-core VMEM budget.
        return 1, step_bytes(1)
    # Prefer >=4 grid steps per batch element (pipeline depth, megacore work)
    # without dropping to the tH=1 per-step-overhead cliff.
    deep = [d for d in fitting if d > 1 and H // d >= 4]
    tH = deep[0] if deep else fitting[0]
    # TODO(synk): allow non-divisor tH (pl.cdiv grid + row masking) so prime /
    # odd H does not force a single-step schedule.
    return tH, step_bytes(tH)


def _rep_upsample_nhwc(x_nhwc, W3, W1, g3, bt3, m3, v3, g1, bt1, m1, v1, eps,
                       compute_dtype, out_dtype, mxu_precision):
    N, H, W, C = x_nhwc.shape
    compute_dtype = jnp.dtype(compute_dtype)
    out_dtype = jnp.dtype(out_dtype)

    # --- fold BN (running stats) into the ConvT weights (== switch_to_deploy)
    t3 = g3 / jnp.sqrt(v3 + eps)
    t1 = g1 / jnp.sqrt(v1 + eps)
    W3f = W3.astype(jnp.float32) * t3[None, :, None, None]        # (Cin, Cout, 3, 3)
    W1f = W1.astype(jnp.float32) * t1[None, :, None, None]        # (Cin, Cout, 1, 1)
    W_rep = W3f.at[:, :, 1, 1].add(W1f[:, :, 0, 0])
    bias = (bt3 - m3 * t3) + (bt1 - m1 * t1)                      # (C,)

    # --- fused block-sparse weight: row blocks = views [(0,0),(0,1),(1,0),(1,1)]
    #     column blocks = output parities [(0,0),(0,1),(1,0),(1,1)]  (CxC each)
    def tap(kh, kw):
        return W_rep[:, :, kh, kw]                                # (Cin, Cout)
    Z = jnp.zeros((C, C), jnp.float32)
    w_big = jnp.block([
        [tap(1, 1), tap(1, 2), tap(2, 1), tap(2, 2)],             # view ( 0,  0)
        [Z,         tap(1, 0), Z,         tap(2, 0)],             # view ( 0, +1)
        [Z,         Z,         tap(0, 1), tap(0, 2)],             # view (+1,  0)
        [Z,         Z,         Z,         tap(0, 0)],             # view (+1, +1)
    ]).astype(compute_dtype)
    bias2 = jnp.concatenate([bias, bias]).reshape(1, 1, 2 * C).astype(jnp.float32)

    # --- separable bilinear weights (resident in VMEM, one DMA for the grid)
    rw = jnp.transpose(_parity_weights(H), (2, 0, 1)).reshape(H, 1, 4)
    cw = jnp.transpose(_parity_weights(W), (2, 0, 1)).reshape(1, W, 4)

    # --- cast + 1-px zero halo (exact for align_corners=True border taps) ----
    x = x_nhwc.astype(compute_dtype)
    xpad = jnp.pad(x, ((0, 0), (1, 1), (1, 1), (0, 0)))

    cap = _vmem_capacity_bytes()
    tH, est_bytes = _pick_row_tile(H, W, C, compute_dtype.itemsize,
                                   out_dtype.itemsize,
                                   budget_bytes=int(0.4 * cap))
    vmem_limit = int(min(max(int(1.25 * est_bytes), 32 * 2 ** 20),
                         int(0.95 * cap)))

    prec = mxu_precision if compute_dtype == jnp.dtype(jnp.float32) else None
    kernel = functools.partial(_rep_upsample_kernel, mxu_precision=prec)

    out = pl.pallas_call(
        kernel,
        out_shape=jax.ShapeDtypeStruct((N, H, 2, W, 2 * C), out_dtype),
        grid=(N, H // tH),
        in_specs=[
            pl.BlockSpec((1, H + 2, W + 2, C), lambda n, t: (n, 0, 0, 0)),
            pl.BlockSpec((4 * C, 4 * C), lambda n, t: (0, 0)),
            pl.BlockSpec((1, 1, 2 * C), lambda n, t: (0, 0, 0)),
            pl.BlockSpec((H, 1, 4), lambda n, t: (0, 0, 0)),
            pl.BlockSpec((1, W, 4), lambda n, t: (0, 0, 0)),
        ],
        out_specs=pl.BlockSpec((1, tH, 2, W, 2 * C), lambda n, t: (n, t, 0, 0, 0)),
        compiler_params=pltpu.CompilerParams(
            dimension_semantics=("parallel", "parallel"),
            vmem_limit_bytes=vmem_limit),
    )(xpad, w_big, bias2, rw, cw)

    # (N, H, 2, W, 2C) == (N, H, 2, W, 2, C): parity interleave is a free reshape.
    return out.reshape(N, 2 * H, 2 * W, C)


# ------------------------------- public wrappers -------------------------------
@functools.partial(jax.jit,
                   static_argnames=("compute_dtype", "out_dtype", "mxu_precision"))
def rep_upsample_forward_nhwc(x_nhwc, W3, W1, g3, bt3, m3, v3, g1, bt1, m1, v1,
                              eps=1e-5, *, compute_dtype=jnp.float32,
                              out_dtype=jnp.float32,
                              mxu_precision=lax.Precision.DEFAULT):
    """NHWC-in / NHWC-out RepUpsample (no NCHW<->NHWC HBM round-trips)."""
    return _rep_upsample_nhwc(x_nhwc, W3, W1, g3, bt3, m3, v3, g1, bt1, m1, v1,
                              eps, compute_dtype, out_dtype, mxu_precision)


@functools.partial(jax.jit,
                   static_argnames=("compute_dtype", "out_dtype", "mxu_precision"))
def rep_upsample_forward(x_nchw, W3, W1, g3, bt3, m3, v3, g1, bt1, m1, v1,
                         eps=1e-5, *, compute_dtype=jnp.float32,
                         out_dtype=jnp.float32,
                         mxu_precision=lax.Precision.DEFAULT):
    """PyTorch-layout wrapper: (N, C, H, W) -> (N, C, 2H, 2W)."""
    x = jnp.transpose(x_nchw, (0, 2, 3, 1))
    y = _rep_upsample_nhwc(x, W3, W1, g3, bt3, m3, v3, g1, bt1, m1, v1,
                           eps, compute_dtype, out_dtype, mxu_precision)
    return jnp.transpose(y, (0, 3, 1, 2))


# ----------------------------- numpy reference --------------------------------
def reference_forward(x, W3, W1, g3, bt3, m3, v3, g1, bt1, m1, v1, eps=1e-5):
    x = np.asarray(x, np.float64)
    N, Cin, H, W = x.shape

    def convT(xx, Wt, k, stride, pad, opad):
        Cout = Wt.shape[1]
        Hout = (H - 1) * stride - 2 * pad + k + opad
        Wout = (W - 1) * stride - 2 * pad + k + opad
        y = np.zeros((N, Cout, Hout, Wout))
        for ih in range(H):
            for iw in range(W):
                patch = xx[:, :, ih, iw]                          # (N, Cin)
                for kh in range(k):
                    for kw in range(k):
                        oh = ih * stride + kh - pad
                        ow = iw * stride + kw - pad
                        if 0 <= oh < Hout and 0 <= ow < Wout:
                            y[:, :, oh, ow] += patch @ np.asarray(Wt[:, :, kh, kw], np.float64)
        return y

    def bn(y, g, b, m, v):
        g, b, m, v = (np.asarray(a, np.float64) for a in (g, b, m, v))
        return ((y - m[None, :, None, None]) / np.sqrt(v + eps)[None, :, None, None]
                * g[None, :, None, None] + b[None, :, None, None])

    y3 = bn(convT(x, W3, 3, 2, 1, 1), g3, bt3, m3, v3)
    y1 = bn(convT(x, W1, 1, 2, 0, 1), g1, bt1, m1, v1)

    Ho, Wo = 2 * H, 2 * W
    up = np.zeros((N, Cin, Ho, Wo))
    for oh in range(Ho):
        sh = oh * (H - 1) / (Ho - 1)
        i0 = int(np.floor(sh)); i1 = min(i0 + 1, H - 1); fh = sh - i0
        for ow in range(Wo):
            sw = ow * (W - 1) / (Wo - 1)
            j0 = int(np.floor(sw)); j1 = min(j0 + 1, W - 1); fw = sw - j0
            up[:, :, oh, ow] = ((1 - fh) * (1 - fw) * x[:, :, i0, j0]
                                + (1 - fh) * fw * x[:, :, i0, j1]
                                + fh * (1 - fw) * x[:, :, i1, j0]
                                + fh * fw * x[:, :, i1, j1])

    return np.maximum(y3 + y1 + up, 0.0)


if __name__ == "__main__":
    # in_channels == out_channels is required by the residual bilinear add.
    # C=64 keeps the output lane dim (2C = 128) fully dense on TPU.
    N, C, H, W = 2, 64, 16, 16
    key = jax.random.PRNGKey(0)
    ks = jax.random.split(key, 12)

    x = jax.random.normal(ks[0], (N, C, H, W), jnp.float32)
    W3 = jax.random.normal(ks[1], (C, C, 3, 3), jnp.float32) * 0.1   # ConvT (Cin, Cout, kH, kW)
    W1 = jax.random.normal(ks[2], (C, C, 1, 1), jnp.float32) * 0.1
    g3 = jax.random.uniform(ks[3], (C,), jnp.float32, 0.5, 1.5)
    bt3 = jax.random.normal(ks[4], (C,), jnp.float32) * 0.1
    m3 = jax.random.normal(ks[5], (C,), jnp.float32) * 0.1
    v3 = jax.random.uniform(ks[6], (C,), jnp.float32, 0.5, 1.5)
    g1 = jax.random.uniform(ks[7], (C,), jnp.float32, 0.5, 1.5)
    bt1 = jax.random.normal(ks[8], (C,), jnp.float32) * 0.1
    m1 = jax.random.normal(ks[9], (C,), jnp.float32) * 0.1
    v1 = jax.random.uniform(ks[10], (C,), jnp.float32, 0.5, 1.5)

    args = (x, W3, W1, g3, bt3, m3, v3, g1, bt1, m1, v1)
    ref = reference_forward(*(np.asarray(a) for a in args))

    # High-precision f32 path (explicit HIGHEST MXU precision): tight tolerance.
    out_hi = jax.block_until_ready(
        rep_upsample_forward(*args, mxu_precision=lax.Precision.HIGHEST))
    np.testing.assert_allclose(np.asarray(out_hi), ref, rtol=1e-4, atol=1e-4)

    # Default fast path: f32 storage, DEFAULT MXU precision (single-pass MXU).
    out_def = jax.block_until_ready(rep_upsample_forward(*args))
    np.testing.assert_allclose(np.asarray(out_def), ref, rtol=5e-2, atol=5e-2)

    # bf16 storage / MXU operands (f32 accumulation, f32 VPU math and output).
    out_bf16 = jax.block_until_ready(
        rep_upsample_forward(*args, compute_dtype=jnp.bfloat16))
    np.testing.assert_allclose(np.asarray(out_bf16), ref, rtol=5e-2, atol=1e-1)

    print("KERNEL_OK")
</pallas_src>

<mosaic_0001>
module attributes {stable_mosaic.version = 11 : i64} {
  func.func @_rep_upsample_kernel(%arg0: i32, %arg1: i32, %arg2: memref<1x18x18x64xf32, #tpu.memory_space<vmem>>, %arg3: memref<256x256xf32, #tpu.memory_space<vmem>>, %arg4: memref<1x1x128xf32, #tpu.memory_space<vmem>>, %arg5: memref<16x1x4xf32, #tpu.memory_space<vmem>>, %arg6: memref<1x16x4xf32, #tpu.memory_space<vmem>>, %arg7: memref<1x4x2x16x128xf32, #tpu.memory_space<vmem>>) attributes {dimension_semantics = [#tpu.dimension_semantics<parallel>, #tpu.dimension_semantics<parallel>], iteration_bounds = array<i64: 2, 4>, scalar_prefetch = 0 : i64, scratch_operands = 0 : i64, tpu.core_type = #tpu.core_type<tc>, window_params = [{transform_indices = @transform_0, window_bounds = array<i64: 1, 18, 18, 64>}, {pipeline_mode = #tpu.pipeline_mode<synchronous>, transform_indices = @transform_1, window_bounds = array<i64: 256, 256>}, {pipeline_mode = #tpu.pipeline_mode<synchronous>, transform_indices = @transform_2, window_bounds = array<i64: 1, 1, 128>}, {pipeline_mode = #tpu.pipeline_mode<synchronous>, transform_indices = @transform_3, window_bounds = array<i64: 16, 1, 4>}, {pipeline_mode = #tpu.pipeline_mode<synchronous>, transform_indices = @transform_4, window_bounds = array<i64: 1, 16, 4>}, {transform_indices = @transform_5, window_bounds = array<i64: 1, 4, 2, 16, 128>}]} {
    %c4_i32 = arith.constant 4 : i32
    %0 = arith.muli %arg1, %c4_i32 : i32
    %c0_i32 = arith.constant 0 : i32
    %1 = arith.addi %0, %c0_i32 : i32
    %c0 = arith.constant 0 : index
    %2 = arith.index_cast %1 : i32 to index
    %c0_0 = arith.constant 0 : index
    %c0_1 = arith.constant 0 : index
    %3 = vector.load %arg2[%c0, %2, %c0_0, %c0_1] : memref<1x18x18x64xf32, #tpu.memory_space<vmem>>, vector<1x4x18x64xf32>
    %4 = vector.shape_cast %3 : vector<1x4x18x64xf32> to vector<4x18x64xf32>
    %c1_i32 = arith.constant 1 : i32
    %5 = arith.addi %0, %c1_i32 : i32
    %c0_2 = arith.constant 0 : index
    %6 = arith.index_cast %5 : i32 to index
    %c0_3 = arith.constant 0 : index
    %c0_4 = arith.constant 0 : index
    %7 = vector.load %arg2[%c0_2, %6, %c0_3, %c0_4] : memref<1x18x18x64xf32, #tpu.memory_space<vmem>>, vector<1x4x18x64xf32>
    %8 = vector.shape_cast %7 : vector<1x4x18x64xf32> to vector<4x18x64xf32>
    %c2_i32 = arith.constant 2 : i32
    %9 = arith.addi %0, %c2_i32 : i32
    %c0_5 = arith.constant 0 : index
    %10 = arith.index_cast %9 : i32 to index
    %c0_6 = arith.constant 0 : index
    %c0_7 = arith.constant 0 : index
    %11 = vector.load %arg2[%c0_5, %10, %c0_6, %c0_7] : memref<1x18x18x64xf32, #tpu.memory_space<vmem>>, vector<1x4x18x64xf32>
    %12 = vector.shape_cast %11 : vector<1x4x18x64xf32> to vector<4x18x64xf32>
    %13 = vector.extract_strided_slice %8 {offsets = [0, 1, 0], sizes = [4, 16, 64], strides = [1, 1, 1]} : vector<4x18x64xf32> to vector<4x16x64xf32>
    %14 = vector.extract_strided_slice %8 {offsets = [0, 2, 0], sizes = [4, 16, 64], strides = [1, 1, 1]} : vector<4x18x64xf32> to vector<4x16x64xf32>
    %15 = vector.extract_strided_slice %12 {offsets = [0, 1, 0], sizes = [4, 16, 64], strides = [1, 1, 1]} : vector<4x18x64xf32> to vector<4x16x64xf32>
    %16 = vector.extract_strided_slice %12 {offsets = [0, 2, 0], sizes = [4, 16, 64], strides = [1, 1, 1]} : vector<4x18x64xf32> to vector<4x16x64xf32>
    %17 = tpu.concatenate %13, %14, %15, %16 in 2 : vector<4x16x64xf32>, vector<4x16x64xf32>, vector<4x16x64xf32>, vector<4x16x64xf32> -> vector<4x16x256xf32>
    %18 = vector.shape_cast %17 : vector<4x16x256xf32> to vector<64x256xf32>
    %c0_8 = arith.constant 0 : index
    %c0_9 = arith.constant 0 : index
    %19 = vector.load %arg3[%c0_8, %c0_9] : memref<256x256xf32, #tpu.memory_space<vmem>>, vector<256x256xf32>
    %cst = arith.constant dense<0.000000e+00> : vector<64x256xf32>
    %20 = tpu.matmul %18, %19, %cst {dimension_numbers = #tpu.dot_dimension_numbers<[1], [0], [0], [1], [0, 0, 1, 1], [], []>, precision = #tpu.contract_precision<fp32>} : vector<64x256xf32>, vector<256x256xf32>, vector<64x256xf32> -> vector<64x256xf32>
    %21 = vector.shape_cast %20 : vector<64x256xf32> to vector<4x16x256xf32>
    %22 = arith.index_cast %0 : i32 to index
    %c0_10 = arith.constant 0 : index
    %c0_11 = arith.constant 0 : index
    %23 = vector.load %arg5[%22, %c0_10, %c0_11] : memref<16x1x4xf32, #tpu.memory_space<vmem>>, vector<4x1x4xf32>
    %c0_12 = arith.constant 0 : index
    %c0_13 = arith.constant 0 : index
    %c0_14 = arith.constant 0 : index
    %24 = vector.load %arg6[%c0_12, %c0_13, %c0_14] : memref<1x16x4xf32, #tpu.memory_space<vmem>>, vector<1x16x4xf32>
    %25 = vector.extract_strided_slice %23 {offsets = [0, 0, 0], sizes = [4, 1, 1], strides = [1, 1, 1]} : vector<4x1x4xf32> to vector<4x1x1xf32>
    %26 = vector.broadcast %25 : vector<4x1x1xf32> to vector<4x18x64xf32>
    %27 = arith.mulf %26, %4 : vector<4x18x64xf32>
    %28 = vector.extract_strided_slice %23 {offsets = [0, 0, 1], sizes = [4, 1, 1], strides = [1, 1, 1]} : vector<4x1x4xf32> to vector<4x1x1xf32>
    %29 = vector.broadcast %28 : vector<4x1x1xf32> to vector<4x18x64xf32>
    %30 = arith.mulf %29, %8 : vector<4x18x64xf32>
    %31 = arith.addf %27, %30 : vector<4x18x64xf32>
    %32 = vector.extract_strided_slice %23 {offsets = [0, 0, 2], sizes = [4, 1, 1], strides = [1, 1, 1]} : vector<4x1x4xf32> to vector<4x1x1xf32>
    %33 = vector.broadcast %32 : vector<4x1x1xf32> to vector<4x18x64xf32>
    %34 = arith.mulf %33, %8 : vector<4x18x64xf32>
    %35 = vector.extract_strided_slice %23 {offsets = [0, 0, 3], sizes = [4, 1, 1], strides = [1, 1, 1]} : vector<4x1x4xf32> to vector<4x1x1xf32>
    %36 = vector.broadcast %35 : vector<4x1x1xf32> to vector<4x18x64xf32>
    %37 = arith.mulf %36, %12 : vector<4x18x64xf32>
    %38 = arith.addf %34, %37 : vector<4x18x64xf32>
    %c0_15 = arith.constant 0 : index
    %c0_16 = arith.constant 0 : index
    %c0_17 = arith.constant 0 : index
    %39 = vector.load %arg4[%c0_15, %c0_16, %c0_17] : memref<1x1x128xf32, #tpu.memory_space<vmem>>, vector<1x1x128xf32>
    %40 = vector.extract_strided_slice %21 {offsets = [0, 0, 0], sizes = [4, 16, 128], strides = [1, 1, 1]} : vector<4x16x256xf32> to vector<4x16x128xf32>
    %41 = vector.extract_strided_slice %24 {offsets = [0, 0, 0], sizes = [1, 16, 1], strides = [1, 1, 1]} : vector<1x16x4xf32> to vector<1x16x1xf32>
    %42 = vector.extract_strided_slice %31 {offsets = [0, 0, 0], sizes = [4, 16, 64], strides = [1, 1, 1]} : vector<4x18x64xf32> to vector<4x16x64xf32>
    %43 = vector.broadcast %41 : vector<1x16x1xf32> to vector<4x16x64xf32>
    %44 = arith.mulf %43, %42 : vector<4x16x64xf32>
    %45 = vector.extract_strided_slice %24 {offsets = [0, 0, 1], sizes = [1, 16, 1], strides = [1, 1, 1]} : vector<1x16x4xf32> to vector<1x16x1xf32>
    %46 = vector.extract_strided_slice %31 {offsets = [0, 1, 0], sizes = [4, 16, 64], strides = [1, 1, 1]} : vector<4x18x64xf32> to vector<4x16x64xf32>
    %47 = vector.broadcast %45 : vector<1x16x1xf32> to vector<4x16x64xf32>
    %48 = arith.mulf %47, %46 : vector<4x16x64xf32>
    %49 = arith.addf %44, %48 : vector<4x16x64xf32>
    %50 = vector.extract_strided_slice %24 {offsets = [0, 0, 2], sizes = [1, 16, 1], strides = [1, 1, 1]} : vector<1x16x4xf32> to vector<1x16x1xf32>
    %51 = vector.extract_strided_slice %31 {offsets = [0, 1, 0], sizes = [4, 16, 64], strides = [1, 1, 1]} : vector<4x18x64xf32> to vector<4x16x64xf32>
    %52 = vector.broadcast %50 : vector<1x16x1xf32> to vector<4x16x64xf32>
    %53 = arith.mulf %52, %51 : vector<4x16x64xf32>
    %54 = vector.extract_strided_slice %24 {offsets = [0, 0, 3], sizes = [1, 16, 1], strides = [1, 1, 1]} : vector<1x16x4xf32> to vector<1x16x1xf32>
    %55 = vector.extract_strided_slice %31 {offsets = [0, 2, 0], sizes = [4, 16, 64], strides = [1, 1, 1]} : vector<4x18x64xf32> to vector<4x16x64xf32>
    %56 = vector.broadcast %54 : vector<1x16x1xf32> to vector<4x16x64xf32>
    %57 = arith.mulf %56, %55 : vector<4x16x64xf32>
    %58 = arith.addf %53, %57 : vector<4x16x64xf32>
    %59 = tpu.concatenate %49, %58 in 2 : vector<4x16x64xf32>, vector<4x16x64xf32> -> vector<4x16x128xf32>
    %60 = arith.addf %40, %59 : vector<4x16x128xf32>
    %61 = vector.broadcast %39 : vector<1x1x128xf32> to vector<4x16x128xf32>
    %62 = arith.addf %60, %61 : vector<4x16x128xf32>
    %cst_18 = arith.constant 0.000000e+00 : f32
    %63 = vector.broadcast %cst_18 : f32 to vector<4x16x128xf32>
    %64 = arith.maximumf %62, %63 : vector<4x16x128xf32>
    %c0_19 = arith.constant 0 : index
    %c0_20 = arith.constant 0 : index
    %c0_21 = arith.constant 0 : index
    %c0_22 = arith.constant 0 : index
    %c0_23 = arith.constant 0 : index
    %65 = vector.load %arg7[%c0_19, %c0_20, %c0_21, %c0_22, %c0_23] : memref<1x4x2x16x128xf32, #tpu.memory_space<vmem>>, vector<1x4x1x16x128xf32>
    %66 = vector.shape_cast %65 : vector<1x4x1x16x128xf32> to vector<4x16x128xf32>
    %67 = vector.shape_cast %64 : vector<4x16x128xf32> to vector<1x4x1x16x128xf32>
    tpu.vector_store %arg7[%c0_19, %c0_20, %c0_21, %c0_22, %c0_23], %67 {strides = array<i32>} : memref<1x4x2x16x128xf32, #tpu.memory_space<vmem>>, vector<1x4x1x16x128xf32>,
    %68 = vector.extract_strided_slice %21 {offsets = [0, 0, 128], sizes = [4, 16, 128], strides = [1, 1, 1]} : vector<4x16x256xf32> to vector<4x16x128xf32>
    %69 = vector.extract_strided_slice %24 {offsets = [0, 0, 0], sizes = [1, 16, 1], strides = [1, 1, 1]} : vector<1x16x4xf32> to vector<1x16x1xf32>
    %70 = vector.extract_strided_slice %38 {offsets = [0, 0, 0], sizes = [4, 16, 64], strides = [1, 1, 1]} : vector<4x18x64xf32> to vector<4x16x64xf32>
    %71 = vector.broadcast %69 : vector<1x16x1xf32> to vector<4x16x64xf32>
    %72 = arith.mulf %71, %70 : vector<4x16x64xf32>
    %73 = vector.extract_strided_slice %24 {offsets = [0, 0, 1], sizes = [1, 16, 1], strides = [1, 1, 1]} : vector<1x16x4xf32> to vector<1x16x1xf32>
    %74 = vector.extract_strided_slice %38 {offsets = [0, 1, 0], sizes = [4, 16, 64], strides = [1, 1, 1]} : vector<4x18x64xf32> to vector<4x16x64xf32>
    %75 = vector.broadcast %73 : vector<1x16x1xf32> to vector<4x16x64xf32>
    %76 = arith.mulf %75, %74 : vector<4x16x64xf32>
    %77 = arith.addf %72, %76 : vector<4x16x64xf32>
    %78 = vector.extract_strided_slice %24 {offsets = [0, 0, 2], sizes = [1, 16, 1], strides = [1, 1, 1]} : vector<1x16x4xf32> to vector<1x16x1xf32>
    %79 = vector.extract_strided_slice %38 {offsets = [0, 1, 0], sizes = [4, 16, 64], strides = [1, 1, 1]} : vector<4x18x64xf32> to vector<4x16x64xf32>
    %80 = vector.broadcast %78 : vector<1x16x1xf32> to vector<4x16x64xf32>
    %81 = arith.mulf %80, %79 : vector<4x16x64xf32>
    %82 = vector.extract_strided_slice %24 {offsets = [0, 0, 3], sizes = [1, 16, 1], strides = [1, 1, 1]} : vector<1x16x4xf32> to vector<1x16x1xf32>
    %83 = vector.extract_strided_slice %38 {offsets = [0, 2, 0], sizes = [4, 16, 64], strides = [1, 1, 1]} : vector<4x18x64xf32> to vector<4x16x64xf32>
    %84 = vector.broadcast %82 : vector<1x16x1xf32> to vector<4x16x64xf32>
    %85 = arith.mulf %84, %83 : vector<4x16x64xf32>
    %86 = arith.addf %81, %85 : vector<4x16x64xf32>
    %87 = tpu.concatenate %77, %86 in 2 : vector<4x16x64xf32>, vector<4x16x64xf32> -> vector<4x16x128xf32>
    %88 = arith.addf %68, %87 : vector<4x16x128xf32>
    %89 = vector.broadcast %39 : vector<1x1x128xf32> to vector<4x16x128xf32>
    %90 = arith.addf %88, %89 : vector<4x16x128xf32>
    %cst_24 = arith.constant 0.000000e+00 : f32
    %91 = vector.broadcast %cst_24 : f32 to vector<4x16x128xf32>
    %92 = arith.maximumf %90, %91 : vector<4x16x128xf32>
    %c0_25 = arith.constant 0 : index
    %c0_26 = arith.constant 0 : index
    %c1 = arith.constant 1 : index
    %c0_27 = arith.constant 0 : index
    %c0_28 = arith.constant 0 : index
    %93 = vector.load %arg7[%c0_25, %c0_26, %c1, %c0_27, %c0_28] : memref<1x4x2x16x128xf32, #tpu.memory_space<vmem>>, vector<1x4x1x16x128xf32>
    %94 = vector.shape_cast %93 : vector<1x4x1x16x128xf32> to vector<4x16x128xf32>
    %95 = vector.shape_cast %92 : vector<4x16x128xf32> to vector<1x4x1x16x128xf32>
    tpu.vector_store %arg7[%c0_25, %c0_26, %c1, %c0_27, %c0_28], %95 {strides = array<i32>} : memref<1x4x2x16x128xf32, #tpu.memory_space<vmem>>, vector<1x4x1x16x128xf32>,
    return
  }
  func.func @transform_0(%arg0: i32, %arg1: i32) -> (i32, i32, i32, i32) {
    %c0_i32 = arith.constant 0 : i32
    %c0_i32_0 = arith.constant 0 : i32
    %c0_i32_1 = arith.constant 0 : i32
    %c0_i32_2 = arith.constant 0 : i32
    return %arg0, %c0_i32, %c0_i32_0, %c0_i32_1 : i32, i32, i32, i32
  }
  func.func @transform_1(%arg0: i32, %arg1: i32) -> (i32, i32) {
    %c0_i32 = arith.constant 0 : i32
    %c0_i32_0 = arith.constant 0 : i32
    %c0_i32_1 = arith.constant 0 : i32
    return %c0_i32, %c0_i32_0 : i32, i32
  }
  func.func @transform_2(%arg0: i32, %arg1: i32) -> (i32, i32, i32) {
    %c0_i32 = arith.constant 0 : i32
    %c0_i32_0 = arith.constant 0 : i32
    %c0_i32_1 = arith.constant 0 : i32
    %c0_i32_2 = arith.constant 0 : i32
    return %c0_i32, %c0_i32_0, %c0_i32_1 : i32, i32, i32
  }
  func.func @transform_3(%arg0: i32, %arg1: i32) -> (i32, i32, i32) {
    %c0_i32 = arith.constant 0 : i32
    %c0_i32_0 = arith.constant 0 : i32
    %c0_i32_1 = arith.constant 0 : i32
    %c0_i32_2 = arith.constant 0 : i32
    return %c0_i32, %c0_i32_0, %c0_i32_1 : i32, i32, i32
  }
  func.func @transform_4(%arg0: i32, %arg1: i32) -> (i32, i32, i32) {
    %c0_i32 = arith.constant 0 : i32
    %c0_i32_0 = arith.constant 0 : i32
    %c0_i32_1 = arith.constant 0 : i32
    %c0_i32_2 = arith.constant 0 : i32
    return %c0_i32, %c0_i32_0, %c0_i32_1 : i32, i32, i32
  }
  func.func @transform_5(%arg0: i32, %arg1: i32) -> (i32, i32, i32, i32, i32) {
    %c0_i32 = arith.constant 0 : i32
    %c0_i32_0 = arith.constant 0 : i32
    %c0_i32_1 = arith.constant 0 : i32
    %c0_i32_2 = arith.constant 0 : i32
    return %arg0, %arg1, %c0_i32, %c0_i32_0, %c0_i32_1 : i32, i32, i32, i32, i32
  }
}

</mosaic_0001>

<llo_original>
// kernel: rep_upsample_forward.1
$region0: #{rep_upsample_forward.1}
  #allocation0 [shape = 'u32[]', space=smem, size = 0x4, offset = 0x4, fixed_abs, tag = 'smem constant byte address 0x4 - core index']
  #allocation1 [shape = 'u32[144,128]{1,0:T(1,128)}', space=vmem, size = 0x12000, scoped, tag = 'internal scratch']
  %s0 = inlined_call_operand.vmem [shape: f32[2,18,18,64], index: 0, kind: input, shape index: {}]
  %s1 = inlined_call_operand.vmem [shape: f32[256,256], index: 1, kind: input, shape index: {}]
  %s2 = inlined_call_operand.vmem [shape: f32[1,1,128], index: 2, kind: input, shape index: {}]
  %s3 = inlined_call_operand.vmem [shape: f32[16,1,4], index: 3, kind: input, shape index: {}]
  %s4 = inlined_call_operand.vmem [shape: f32[1,16,4], index: 4, kind: input, shape index: {}]
  %s5 = inlined_call_operand.vmem [shape: f32[2,16,2,16,128], index: 5, kind: output, shape index: {}]
  %s6 = sld [smem:[#allocation0]]
  $region53: #{rep_upsample_forward.1} parent=0
    _
  %s8 = ssub.s32 1, %s6
  %s9 = scalar_select 0, %s8, %s6
  loop: start=0, step=1, limit=10
  $region2: #{rep_upsample_forward.1} parent=0 // loop_pre_header
    _
  $region3: #{rep_upsample_forward.1} parent=0 // loop_header
    %s11 = sphi 0, %s15
    %p12 = scmp.ge.s32.totalorder %s11, 10
    %s18 = sphi 0, %s30
    %s19 = sphi 0, %s26
    %s20 = sphi 0, %s18
    %s21 = sphi 0, %s19
    %s22 = sphi 0, %s20
    %s23 = sphi 0, %s21
    %s33 = sphi 0, %s35
    %s36 = sphi 0, %s33
    %s37 = sphi 0, %s36
    %s53 = sphi 0, %s37
    %s57 = sphi 0, %s57
    %s59 = sphi 0, %s57
    %s60 = sphi 0, %s59
    %s74 = sphi 0, %s60
    %s78 = sphi 0, %s78
    %s80 = sphi 0, %s78
    %s81 = sphi 0, %s80
    %s95 = sphi 0, %s81
    %s99 = sphi 0, %s99
    %s101 = sphi 0, %s99
    %s102 = sphi 0, %s101
    %s116 = sphi 0, %s102
    %s120 = sphi 0, %s120
    %s122 = sphi 0, %s120
    %s123 = sphi 0, %s122
    %s137 = sphi 0, %s123
    %s145 = sphi 0, %s147
    %s148 = sphi 0, %s145
    %s149 = sphi 0, %s148
    %s165 = sphi 0, %s149
  $region4: #{rep_upsample_forward.1} parent=0 // loop_header_branch
    %14 = sbr.rel (%p12) target = $region8
  $region5: #{rep_upsample_forward.1} parent=0 // loop_body
    %s16 = ssub.s32 %s11, 1
    %s17 = ssub.s32 %s11, 2
    %s24 = sadd.s32 1, %s19
    %p25 = scmp.ge.s32.totalorder %s24, 4
    %s26 = scalar_select %p25, 0, %s24
    %s27 = sadd.s32 1, %s18
    %s28 = scalar_select %p25, %s27, %s18
    %p29 = scmp.ge.s32.totalorder %s28, 2
    %s30 = scalar_select %p29, 0, %s28
    %s31 = ssub.s32 %s18, %s30
    %p32 = scmp.eq.s32.totalorder %s31, 0
    %s34 = sadd.s32 %s33, 1
    %s35 = scalar_select %p32, %s33, %s34
    %p38 = pneg %p32
    %p39 = scmp.eq.s32.totalorder %s11, 7
    %p40 = por %p38, %p39
    %p41 = scmp.ne.s32.totalorder %s33, %s36
    %p42 = scmp.eq.s32.totalorder %s11, 0
    %p43 = por %p41, %p42
    %p44 = scmp.ne.s32.totalorder %s33, %s36
    %p45 = scmp.eq.s32.totalorder %s16, 7
    %p46 = por %p44, %p45
    %p47 = scmp.ne.s32.totalorder %s36, %s37
    %p48 = scmp.eq.s32.totalorder %s16, 0
    %p49 = por %p47, %p48
    %p50 = scmp.ne.s32.totalorder %s36, %s37
    %p51 = scmp.eq.s32.totalorder %s17, 7
    %p52 = por %p50, %p51
    %p54 = scmp.ne.s32.totalorder %s37, %s53
    %p55 = scmp.eq.s32.totalorder %s17, 0
    %p56 = por %p54, %p55
    %s58 = sadd.s32 %s57, 1
    %p61 = scmp.eq.s32.totalorder %s11, 7
    %p62 = scmp.ne.s32.totalorder %s57, %s59
    %p63 = scmp.eq.s32.totalorder %s11, 0
    %p64 = por %p62, %p63
    %p65 = scmp.ne.s32.totalorder %s57, %s59
    %p66 = scmp.eq.s32.totalorder %s16, 7
    %p67 = por %p65, %p66
    %p68 = scmp.ne.s32.totalorder %s59, %s60
    %p69 = scmp.eq.s32.totalorder %s16, 0
    %p70 = por %p68, %p69
    %p71 = scmp.ne.s32.totalorder %s59, %s60
    %p72 = scmp.eq.s32.totalorder %s17, 7
    %p73 = por %p71, %p72
    %p75 = scmp.ne.s32.totalorder %s60, %s74
    %p76 = scmp.eq.s32.totalorder %s17, 0
    %p77 = por %p75, %p76
    %s79 = sadd.s32 %s78, 1
    %p82 = scmp.eq.s32.totalorder %s11, 7
    %p83 = scmp.ne.s32.totalorder %s78, %s80
    %p84 = scmp.eq.s32.totalorder %s11, 0
    %p85 = por %p83, %p84
    %p86 = scmp.ne.s32.totalorder %s78, %s80
    %p87 = scmp.eq.s32.totalorder %s16, 7
    %p88 = por %p86, %p87
    %p89 = scmp.ne.s32.totalorder %s80, %s81
    %p90 = scmp.eq.s32.totalorder %s16, 0
    %p91 = por %p89, %p90
    %p92 = scmp.ne.s32.totalorder %s80, %s81
    %p93 = scmp.eq.s32.totalorder %s17, 7
    %p94 = por %p92, %p93
    %p96 = scmp.ne.s32.totalorder %s81, %s95
    %p97 = scmp.eq.s32.totalorder %s17, 0
    %p98 = por %p96, %p97
    %s100 = sadd.s32 %s99, 1
    %p103 = scmp.eq.s32.totalorder %s11, 7
    %p104 = scmp.ne.s32.totalorder %s99, %s101
    %p105 = scmp.eq.s32.totalorder %s11, 0
    %p106 = por %p104, %p105
    %p107 = scmp.ne.s32.totalorder %s99, %s101
    %p108 = scmp.eq.s32.totalorder %s16, 7
    %p109 = por %p107, %p108
    %p110 = scmp.ne.s32.totalorder %s101, %s102
    %p111 = scmp.eq.s32.totalorder %s16, 0
    %p112 = por %p110, %p111
    %p113 = scmp.ne.s32.totalorder %s101, %s102
    %p114 = scmp.eq.s32.totalorder %s17, 7
    %p115 = por %p113, %p114
    %p117 = scmp.ne.s32.totalorder %s102, %s116
    %p118 = scmp.eq.s32.totalorder %s17, 0
    %p119 = por %p117, %p118
    %s121 = sadd.s32 %s120, 1
    %p124 = scmp.eq.s32.totalorder %s11, 7
    %p125 = scmp.ne.s32.totalorder %s120, %s122
    %p126 = scmp.eq.s32.totalorder %s11, 0
    %p127 = por %p125, %p126
    %p128 = scmp.ne.s32.totalorder %s120, %s122
    %p129 = scmp.eq.s32.totalorder %s16, 7
    %p130 = por %p128, %p129
    %p131 = scmp.ne.s32.totalorder %s122, %s123
    %p132 = scmp.eq.s32.totalorder %s16, 0
    %p133 = por %p131, %p132
    %p134 = scmp.ne.s32.totalorder %s122, %s123
    %p135 = scmp.eq.s32.totalorder %s17, 7
    %p136 = por %p134, %p135
    %p138 = scmp.ne.s32.totalorder %s123, %s137
    %p139 = scmp.eq.s32.totalorder %s17, 0
    %p140 = por %p138, %p139
    %s141 = ssub.s32 %s18, %s30
    %s142 = ssub.s32 %s19, %s26
    %s143 = sor.u32 %s141, %s142
    %p144 = scmp.eq.s32.totalorder %s143, 0
    %s146 = sadd.s32 %s145, 1
    %s147 = scalar_select %p144, %s145, %s146
    %p150 = pneg %p144
    %p151 = scmp.eq.s32.totalorder %s11, 7
    %p152 = por %p150, %p151
    %p153 = scmp.ne.s32.totalorder %s145, %s148
    %p154 = scmp.eq.s32.totalorder %s11, 0
    %p155 = por %p153, %p154
    %p156 = scmp.ne.s32.totalorder %s145, %s148
    %p157 = scmp.eq.s32.totalorder %s16, 7
    %p158 = por %p156, %p157
    %p159 = scmp.ne.s32.totalorder %s148, %s149
    %p160 = scmp.eq.s32.totalorder %s16, 0
    %p161 = por %p159, %p160
    %p162 = scmp.ne.s32.totalorder %s148, %s149
    %p163 = scmp.eq.s32.totalorder %s17, 7
    %p164 = por %p162, %p163
    %p166 = scmp.ne.s32.totalorder %s149, %s165
    %p167 = scmp.eq.s32.totalorder %s17, 0
    %p168 = por %p166, %p167
    %p169 = scmp.le.s32.totalorder 1, %s11
    %p170 = scmp.lt.s32.totalorder %s11, 9
    %p171 = pnand %p169, %p170
    %p172 = pneg %p171
    // Predicated region
    $region9: #{rep_upsample_forward.1} parent=5 // pred_check
      _
    $region10: #{rep_upsample_forward.1} parent=5 // pred_check_branch
      %174 = sbr.rel (%p171) target = $region12
    $region11: #{rep_upsample_forward.1} parent=5 // pred_region
      %s175 = ssub.s32 %s11, 1
      // Predicated region
      $region13: #{rep_upsample_forward.1} parent=11 // pred_check
        %p176 = pneg %p70
      $region14: #{rep_upsample_forward.1} parent=11 // pred_check_branch
        %178 = sbr.rel (%p176) target = $region16
      $region15: #{rep_upsample_forward.1} parent=11 // pred_region
        _
      $region16: #{rep_upsample_forward.1} parent=11 // pred_fallthru
        _
      // Predicated region
      $region17: #{rep_upsample_forward.1} parent=11 // pred_check
        %p179 = pneg %p91
      $region18: #{rep_upsample_forward.1} parent=11 // pred_check_branch
        %181 = sbr.rel (%p179) target = $region20
      $region19: #{rep_upsample_forward.1} parent=11 // pred_region
        _
      $region20: #{rep_upsample_forward.1} parent=11 // pred_fallthru
        _
      // Predicated region
      $region21: #{rep_upsample_forward.1} parent=11 // pred_check
        %p182 = pneg %p112
      $region22: #{rep_upsample_forward.1} parent=11 // pred_check_branch
        %184 = sbr.rel (%p182) target = $region24
      $region23: #{rep_upsample_forward.1} parent=11 // pred_region
        _
      $region24: #{rep_upsample_forward.1} parent=11 // pred_fallthru
        _
      // Predicated region
      $region25: #{rep_upsample_forward.1} parent=11 // pred_check
        %p185 = pneg %p133
      $region26: #{rep_upsample_forward.1} parent=11 // pred_check_branch
        %187 = sbr.rel (%p185) target = $region28
      $region27: #{rep_upsample_forward.1} parent=11 // pred_region
        _
      $region28: #{rep_upsample_forward.1} parent=11 // pred_fallthru
        _
    $region12: #{rep_upsample_forward.1} parent=5 // pred_fallthru
      _
    %p188 = scmp.lt.s32.totalorder %s11, 8
    // Predicated region
    $region29: #{rep_upsample_forward.1} parent=5 // pred_check
      %p189 = pneg %p188
    $region30: #{rep_upsample_forward.1} parent=5 // pred_check_branch
      %191 = sbr.rel (%p189) target = $region32
    $region31: #{rep_upsample_forward.1} parent=5 // pred_region
      // Predicated region
      $region33: #{rep_upsample_forward.1} parent=31 // pred_check
        %p192 = pneg %p43
      $region34: #{rep_upsample_forward.1} parent=31 // pred_check_branch
        %194 = sbr.rel (%p192) target = $region36
      $region35: #{rep_upsample_forward.1} parent=31 // pred_region
        %p195 = scmp.lt.s32.totalorder %s18, 1
        %s196 = scalar_select %p195, %s18, 1
        %s197 = smul.addr %s196, 54
        %s198 = smul.addr %s197, 8
        %s199 = scalar_lea.vmem %s0, %s198
      $region36: #{rep_upsample_forward.1} parent=31 // pred_fallthru
        _
    $region32: #{rep_upsample_forward.1} parent=5 // pred_fallthru
      _
    %p200 = scmp.le.s32.totalorder 1, %s11
    %p201 = scmp.lt.s32.totalorder %s11, 9
    %p202 = pnand %p200, %p201
    %p203 = pneg %p202
    // Predicated region
    $region37: #{rep_upsample_forward.1} parent=5 // pred_check
      _
    $region38: #{rep_upsample_forward.1} parent=5 // pred_check_branch
      %205 = sbr.rel (%p202) target = $region40
    $region39: #{rep_upsample_forward.1} parent=5 // pred_region
      %s206 = ssub.s32 %s11, 1
      %p207 = scmp.lt.s32.totalorder %s20, 1
      %s208 = scalar_select %p207, %s20, 1
      %s209 = smul.addr %s208, 54
      %s210 = smul.addr %s209, 8
      %s211 = scalar_lea.vmem %s0, %s210
      %p212 = pneg %p49
      %p213 = pneg %p46
      %p214 = pneg %p70
      %p215 = pneg %p67
      %p216 = pneg %p91
      %p217 = pneg %p88
      %p218 = pneg %p112
      %p219 = pneg %p109
      %p220 = pneg %p133
      %p221 = pneg %p130
      %p222 = pneg %p161
      %p223 = pneg %p158
      %s224 = smul.u32 4, %s21
      %p225 = scmp.lt.s32.totalorder %s20, 1
      %s226 = scalar_select %p225, %s20, 1
      %p227 = scmp.lt.s32.totalorder %s224, 15
      %s228 = scalar_select %p227, %s224, 15
      %s229 = smul.addr %s228, 4
      %s230 = smul.addr %s226, 64
      %s231 = sadd.s32 %s229, %s230
      %s232 = smul.addr %s231, 8
      %s233 = scalar_lea.vmem %s5, %s232
      %p234 = scmp.lt.s32.totalorder %s20, 1
      %s235 = scalar_select %p234, %s20, 1
      %s236 = smul.addr %s235, 54
      %s237 = smul.addr %s236, 8
      %s238 = scalar_lea.vmem %s0, %s237
      %s239 = smul.u32 4, %s21
      %p240 = scmp.lt.s32.totalorder %s20, 1
      %s241 = scalar_select %p240, %s20, 1
      %p242 = scmp.lt.s32.totalorder %s239, 15
      %s243 = scalar_select %p242, %s239, 15
      %s244 = smul.addr %s243, 4
      %s245 = smul.addr %s241, 64
      %s246 = sadd.s32 %s244, %s245
      %s247 = smul.addr %s246, 8
      %s248 = scalar_lea.vmem %s5, %s247
      %s249 = smul.u32 4, %s21
      %s250 = smul.u32 %s21, 4
      %s251 = smul.u32 %s250, 24
      %s252 = scalar_lea.vmem %s238, %s251
      %v253 = vld [vmem:[%s252] sm:$0xff]
      %v254 = vld [vmem:[%s252 + $0x8] sm:$0xff]
      %v255 = vld [vmem:[%s252 + $0x10] sm:$0x3]
      %v256 = vld [vmem:[%s252 + $0x18] sm:$0xff]
      %v257 = vld [vmem:[%s252 + $0x20] sm:$0xff]
      %v258 = vld [vmem:[%s252 + $0x28] sm:$0x3]
      %v259 = vld [vmem:[%s252 + $0x30] sm:$0xff]
      %v260 = vld [vmem:[%s252 + $0x38] sm:$0xff]
      %v261 = vld [vmem:[%s252 + $0x40] sm:$0x3]
      %v262 = vld [vmem:[%s252 + $0x48] sm:$0xff]
      %v263 = vld [vmem:[%s252 + $0x50] sm:$0xff]
      %v264 = vld [vmem:[%s252 + $0x58] sm:$0x3]
      %s265 = sadd.s32 %s250, 1
      %s266 = smul.u32 %s265, 24
      %s267 = scalar_lea.vmem %s238, %s266
      %v268 = vld [vmem:[%s267] sm:$0xff]
      %v269 = vld [vmem:[%s267 + $0x8] sm:$0xff]
      %v270 = vld [vmem:[%s267 + $0x10] sm:$0x3]
      %v271 = vld [vmem:[%s267 + $0x18] sm:$0xff]
      %v272 = vld [vmem:[%s267 + $0x20] sm:$0xff]
      %v273 = vld [vmem:[%s267 + $0x28] sm:$0x3]
      %v274 = vld [vmem:[%s267 + $0x30] sm:$0xff]
      %v275 = vld [vmem:[%s267 + $0x38] sm:$0xff]
      %v276 = vld [vmem:[%s267 + $0x40] sm:$0x3]
      %v277 = vld [vmem:[%s267 + $0x48] sm:$0xff]
      %v278 = vld [vmem:[%s267 + $0x50] sm:$0xff]
      %v279 = vld [vmem:[%s267 + $0x58] sm:$0x3]
      %s280 = sadd.s32 %s250, 2
      %s281 = smul.u32 %s280, 24
      %s282 = scalar_lea.vmem %s238, %s281
      %v283 = vld [vmem:[%s282] sm:$0xff]
      %v284 = vld [vmem:[%s282 + $0x8] sm:$0xff]
      %v285 = vld [vmem:[%s282 + $0x10] sm:$0x3]
      %v286 = vld [vmem:[%s282 + $0x18] sm:$0xff]
      %v287 = vld [vmem:[%s282 + $0x20] sm:$0xff]
      %v288 = vld [vmem:[%s282 + $0x28] sm:$0x3]
      %v289 = vld [vmem:[%s282 + $0x30] sm:$0xff]
      %v290 = vld [vmem:[%s282 + $0x38] sm:$0xff]
      %v291 = vld [vmem:[%s282 + $0x40] sm:$0x3]
      %v292 = vld [vmem:[%s282 + $0x48] sm:$0xff]
      %v293 = vld [vmem:[%s282 + $0x50] sm:$0xff]
      %v294 = vld [vmem:[%s282 + $0x58] sm:$0x3]
      %vm307 = vcmask 1046528
      %v308 = vrot.slane %v268, 1
      %v309 = vrot.slane %v269, 1
      %v310 = vsel %vm307, %v308, %v309
      %v311 = vrot.slane %v270, 1
      %v312 = vsel %vm307, %v309, %v311
      %v313 = vrot.slane %v271, 1
      %v314 = vrot.slane %v272, 1
      %v315 = vsel %vm307, %v313, %v314
      %v316 = vrot.slane %v273, 1
      %v317 = vsel %vm307, %v314, %v316
      %v318 = vrot.slane %v274, 1
      %v319 = vrot.slane %v275, 1
      %v320 = vsel %vm307, %v318, %v319
      %v321 = vrot.slane %v276, 1
      %v322 = vsel %vm307, %v319, %v321
      %v323 = vrot.slane %v277, 1
      %v324 = vrot.slane %v278, 1
      %v325 = vsel %vm307, %v323, %v324
      %v326 = vrot.slane %v279, 1
      %v327 = vsel %vm307, %v324, %v326
      %328 = vrot.lane.b32.xlu0 %v310, 64
      %v329 = vpop.permute.xlu0 %328
      %330 = vrot.lane.b32.xlu0 %v312, 64
      %v331 = vpop.permute.xlu0 %330
      %332 = vrot.lane.b32.xlu0 %v311, 64
      %v333 = vpop.permute.xlu0 %332
      %334 = vrot.lane.b32.xlu0 %v315, 64
      %v335 = vpop.permute.xlu0 %334
      %336 = vrot.lane.b32.xlu0 %v317, 64
      %v337 = vpop.permute.xlu0 %336
      %338 = vrot.lane.b32.xlu0 %v316, 64
      %v339 = vpop.permute.xlu0 %338
      %340 = vrot.lane.b32.xlu0 %v320, 64
      %v341 = vpop.permute.xlu0 %340
      %342 = vrot.lane.b32.xlu0 %v322, 64
      %v343 = vpop.permute.xlu0 %342
      %344 = vrot.lane.b32.xlu0 %v321, 64
      %v345 = vpop.permute.xlu0 %344
      %346 = vrot.lane.b32.xlu0 %v325, 64
      %v347 = vpop.permute.xlu0 %346
      %348 = vrot.lane.b32.xlu0 %v327, 64
      %v349 = vpop.permute.xlu0 %348
      %350 = vrot.lane.b32.xlu0 %v326, 64
      %v351 = vpop.permute.xlu0 %350
      %v376 = vrot.slane %v283, 1
      %v377 = vrot.slane %v284, 1
      %v378 = vsel %vm307, %v376, %v377
      %v379 = vrot.slane %v285, 1
      %v380 = vsel %vm307, %v377, %v379
      %v381 = vrot.slane %v286, 1
      %v382 = vrot.slane %v287, 1
      %v383 = vsel %vm307, %v381, %v382
      %v384 = vrot.slane %v288, 1
      %v385 = vsel %vm307, %v382, %v384
      %v386 = vrot.slane %v289, 1
      %v387 = vrot.slane %v290, 1
      %v388 = vsel %vm307, %v386, %v387
      %v389 = vrot.slane %v291, 1
      %v390 = vsel %vm307, %v387, %v389
      %v391 = vrot.slane %v292, 1
      %v392 = vrot.slane %v293, 1
      %v393 = vsel %vm307, %v391, %v392
      %v394 = vrot.slane %v294, 1
      %v395 = vsel %vm307, %v392, %v394
      %396 = vrot.lane.b32.xlu0 %v378, 64
      %v397 = vpop.permute.xlu0 %396
      %398 = vrot.lane.b32.xlu0 %v380, 64
      %v399 = vpop.permute.xlu0 %398
      %400 = vrot.lane.b32.xlu0 %v379, 64
      %v401 = vpop.permute.xlu0 %400
      %402 = vrot.lane.b32.xlu0 %v383, 64
      %v403 = vpop.permute.xlu0 %402
      %404 = vrot.lane.b32.xlu0 %v385, 64
      %v405 = vpop.permute.xlu0 %404
      %406 = vrot.lane.b32.xlu0 %v384, 64
      %v407 = vpop.permute.xlu0 %406
      %408 = vrot.lane.b32.xlu0 %v388, 64
      %v409 = vpop.permute.xlu0 %408
      %410 = vrot.lane.b32.xlu0 %v390, 64
      %v411 = vpop.permute.xlu0 %410
      %412 = vrot.lane.b32.xlu0 %v389, 64
      %v413 = vpop.permute.xlu0 %412
      %414 = vrot.lane.b32.xlu0 %v393, 64
      %v415 = vpop.permute.xlu0 %414
      %416 = vrot.lane.b32.xlu0 %v395, 64
      %v417 = vpop.permute.xlu0 %416
      %418 = vrot.lane.b32.xlu0 %v394, 64
      %v419 = vpop.permute.xlu0 %418
      %vm432 = vcmask 523264
      %v433 = vsel %vm432, %v268, %v329
      %v434 = vsel %vm432, %v269, %v331
      %v435 = vsel %vm432, %v270, %v333
      %v436 = vsel %vm432, %v271, %v335
      %v437 = vsel %vm432, %v272, %v337
      %v438 = vsel %vm432, %v273, %v339
      %v439 = vsel %vm432, %v274, %v341
      %v440 = vsel %vm432, %v275, %v343
      %v441 = vsel %vm432, %v276, %v345
      %v442 = vsel %vm432, %v277, %v347
      %v443 = vsel %vm432, %v278, %v349
      %v444 = vsel %vm432, %v279, %v351
      %v445 = vsel %vm432, %v283, %v397
      %v446 = vsel %vm432, %v284, %v399
      %v447 = vsel %vm432, %v285, %v401
      %v448 = vsel %vm432, %v286, %v403
      %v449 = vsel %vm432, %v287, %v405
      %v450 = vsel %vm432, %v288, %v407
      %v451 = vsel %vm432, %v289, %v409
      %v452 = vsel %vm432, %v290, %v411
      %v453 = vsel %vm432, %v291, %v413
      %v454 = vsel %vm432, %v292, %v415
      %v455 = vsel %vm432, %v293, %v417
      %v456 = vsel %vm432, %v294, %v419
      %v481 = vrot.slane %v433, 1
      %v482 = vrot.slane %v434, 1
      %v483 = vsel %vm307, %v481, %v482
      %v484 = vrot.slane %v445, 1
      %v485 = vrot.slane %v446, 1
      %v486 = vsel %vm307, %v484, %v485
      %v487 = vrot.slane %v435, 1
      %v488 = vsel %vm307, %v482, %v487
      %v489 = vrot.slane %v447, 1
      %v490 = vsel %vm307, %v485, %v489
      %v491 = vrot.slane %v436, 1
      %v492 = vrot.slane %v437, 1
      %v493 = vsel %vm307, %v491, %v492
      %v494 = vrot.slane %v448, 1
      %v495 = vrot.slane %v449, 1
      %v496 = vsel %vm307, %v494, %v495
      %v497 = vrot.slane %v438, 1
      %v498 = vsel %vm307, %v492, %v497
      %v499 = vrot.slane %v450, 1
      %v500 = vsel %vm307, %v495, %v499
      %v501 = vrot.slane %v439, 1
      %v502 = vrot.slane %v440, 1
      %v503 = vsel %vm307, %v501, %v502
      %v504 = vrot.slane %v451, 1
      %v505 = vrot.slane %v452, 1
      %v506 = vsel %vm307, %v504, %v505
      %v507 = vrot.slane %v441, 1
      %v508 = vsel %vm307, %v502, %v507
      %v509 = vrot.slane %v453, 1
      %v510 = vsel %vm307, %v505, %v509
      %v511 = vrot.slane %v442, 1
      %v512 = vrot.slane %v443, 1
      %v513 = vsel %vm307, %v511, %v512
      %v514 = vrot.slane %v454, 1
      %v515 = vrot.slane %v455, 1
      %v516 = vsel %vm307, %v514, %v515
      %v517 = vrot.slane %v444, 1
      %v518 = vsel %vm307, %v512, %v517
      %v519 = vrot.slane %v456, 1
      %v520 = vsel %vm307, %v515, %v519
      %v537 = vld [vmem:[%s1] sm:$0xff]
      %v538 = vld [vmem:[%s1 + $0x8] sm:$0xff]
      %v539 = vld [vmem:[%s1 + $0x10] sm:$0xff]
      %v540 = vld [vmem:[%s1 + $0x18] sm:$0xff]
      %v541 = vld [vmem:[%s1 + $0x20] sm:$0xff]
      %v542 = vld [vmem:[%s1 + $0x28] sm:$0xff]
      %v543 = vld [vmem:[%s1 + $0x30] sm:$0xff]
      %v544 = vld [vmem:[%s1 + $0x38] sm:$0xff]
      %v545 = vld [vmem:[%s1 + $0x40] sm:$0xff]
      %v546 = vld [vmem:[%s1 + $0x48] sm:$0xff]
      %v547 = vld [vmem:[%s1 + $0x50] sm:$0xff]
      %v548 = vld [vmem:[%s1 + $0x58] sm:$0xff]
      %v549 = vld [vmem:[%s1 + $0x60] sm:$0xff]
      %v550 = vld [vmem:[%s1 + $0x68] sm:$0xff]
      %v551 = vld [vmem:[%s1 + $0x70] sm:$0xff]
      %v552 = vld [vmem:[%s1 + $0x78] sm:$0xff]
      %v553 = vld [vmem:[%s1 + $0x80] sm:$0xff]
      %v554 = vld [vmem:[%s1 + $0x88] sm:$0xff]
      %v555 = vld [vmem:[%s1 + $0x90] sm:$0xff]
      %v556 = vld [vmem:[%s1 + $0x98] sm:$0xff]
      %v557 = vld [vmem:[%s1 + $0xa0] sm:$0xff]
      %v558 = vld [vmem:[%s1 + $0xa8] sm:$0xff]
      %v559 = vld [vmem:[%s1 + $0xb0] sm:$0xff]
      %v560 = vld [vmem:[%s1 + $0xb8] sm:$0xff]
      %v561 = vld [vmem:[%s1 + $0xc0] sm:$0xff]
      %v562 = vld [vmem:[%s1 + $0xc8] sm:$0xff]
      %v563 = vld [vmem:[%s1 + $0xd0] sm:$0xff]
      %v564 = vld [vmem:[%s1 + $0xd8] sm:$0xff]
      %v565 = vld [vmem:[%s1 + $0xe0] sm:$0xff]
      %v566 = vld [vmem:[%s1 + $0xe8] sm:$0xff]
      %v567 = vld [vmem:[%s1 + $0xf0] sm:$0xff]
      %v568 = vld [vmem:[%s1 + $0xf8] sm:$0xff]
      %v569 = vld [vmem:[%s1 + $0x100] sm:$0xff]
      %v570 = vld [vmem:[%s1 + $0x108] sm:$0xff]
      %v571 = vld [vmem:[%s1 + $0x110] sm:$0xff]
      %v572 = vld [vmem:[%s1 + $0x118] sm:$0xff]
      %v573 = vld [vmem:[%s1 + $0x120] sm:$0xff]
      %v574 = vld [vmem:[%s1 + $0x128] sm:$0xff]
      %v575 = vld [vmem:[%s1 + $0x130] sm:$0xff]
      %v576 = vld [vmem:[%s1 + $0x138] sm:$0xff]
      %v577 = vld [vmem:[%s1 + $0x140] sm:$0xff]
      %v578 = vld [vmem:[%s1 + $0x148] sm:$0xff]
      %v579 = vld [vmem:[%s1 + $0x150] sm:$0xff]
      %v580 = vld [vmem:[%s1 + $0x158] sm:$0xff]
      %v581 = vld [vmem:[%s1 + $0x160] sm:$0xff]
      %v582 = vld [vmem:[%s1 + $0x168] sm:$0xff]
      %v583 = vld [vmem:[%s1 + $0x170] sm:$0xff]
      %v584 = vld [vmem:[%s1 + $0x178] sm:$0xff]
      %v585 = vld [vmem:[%s1 + $0x180] sm:$0xff]
      %v586 = vld [vmem:[%s1 + $0x188] sm:$0xff]
      %v587 = vld [vmem:[%s1 + $0x190] sm:$0xff]
      %v588 = vld [vmem:[%s1 + $0x198] sm:$0xff]
      %v589 = vld [vmem:[%s1 + $0x1a0] sm:$0xff]
      %v590 = vld [vmem:[%s1 + $0x1a8] sm:$0xff]
      %v591 = vld [vmem:[%s1 + $0x1b0] sm:$0xff]
      %v592 = vld [vmem:[%s1 + $0x1b8] sm:$0xff]
      %v593 = vld [vmem:[%s1 + $0x1c0] sm:$0xff]
      %v594 = vld [vmem:[%s1 + $0x1c8] sm:$0xff]
      %v595 = vld [vmem:[%s1 + $0x1d0] sm:$0xff]
      %v596 = vld [vmem:[%s1 + $0x1d8] sm:$0xff]
      %v597 = vld [vmem:[%s1 + $0x1e0] sm:$0xff]
      %v598 = vld [vmem:[%s1 + $0x1e8] sm:$0xff]
      %v599 = vld [vmem:[%s1 + $0x1f0] sm:$0xff]
      %v600 = vld [vmem:[%s1 + $0x1f8] sm:$0xff]
      %v601 = vand.u32 %v538, 4294901760
      %602 = vmatprep.subr.mxu0 %v601
      %v603 = vand.u32 %v537, 4294901760
      %604 = vmatpush1.msra.mxu0 %v603
      %v605 = vand.u32 %v540, 4294901760
      %606 = vmatprep.subr.mxu0 %v605
      %v607 = vand.u32 %v539, 4294901760
      %608 = vmatpush1.msra.mxu0 %v607
      %v609 = vand.u32 %v542, 4294901760
      %610 = vmatprep.subr.mxu0 %v609
      %v611 = vand.u32 %v541, 4294901760
      %612 = vmatpush1.msra.mxu0 %v611
      %v613 = vand.u32 %v544, 4294901760
      %614 = vmatprep.subr.mxu0 %v613
      %v615 = vand.u32 %v543, 4294901760
      %616 = vmatpush1.msra.mxu0 %v615
      %v617 = vand.u32 %v546, 4294901760
      %618 = vmatprep.subr.mxu0 %v617
      %v619 = vand.u32 %v545, 4294901760
      %620 = vmatpush1.msra.mxu0 %v619
      %v621 = vand.u32 %v548, 4294901760
      %622 = vmatprep.subr.mxu0 %v621
      %v623 = vand.u32 %v547, 4294901760
      %624 = vmatpush1.msra.mxu0 %v623
      %v625 = vand.u32 %v550, 4294901760
      %626 = vmatprep.subr.mxu0 %v625
      %v627 = vand.u32 %v549, 4294901760
      %628 = vmatpush1.msra.mxu0 %v627
      %v629 = vand.u32 %v552, 4294901760
      %630 = vmatprep.subr.mxu0 %v629
      %v631 = vand.u32 %v551, 4294901760
      %632 = vmatpush1.msra.mxu0 %v631
      %v633 = vand.u32 %v554, 4294901760
      %634 = vmatprep.subr.mxu0 %v633
      %v635 = vand.u32 %v553, 4294901760
      %636 = vmatpush1.msra.mxu0 %v635
      %v637 = vand.u32 %v556, 4294901760
      %638 = vmatprep.subr.mxu0 %v637
      %v639 = vand.u32 %v555, 4294901760
      %640 = vmatpush1.msra.mxu0 %v639
      %v641 = vand.u32 %v558, 4294901760
      %642 = vmatprep.subr.mxu0 %v641
      %v643 = vand.u32 %v557, 4294901760
      %644 = vmatpush1.msra.mxu0 %v643
      %v645 = vand.u32 %v560, 4294901760
      %646 = vmatprep.subr.mxu0 %v645
      %v647 = vand.u32 %v559, 4294901760
      %648 = vmatpush1.msra.mxu0 %v647
      %v649 = vand.u32 %v562, 4294901760
      %650 = vmatprep.subr.mxu0 %v649
      %v651 = vand.u32 %v561, 4294901760
      %652 = vmatpush1.msra.mxu0 %v651
      %v653 = vand.u32 %v564, 4294901760
      %654 = vmatprep.subr.mxu0 %v653
      %v655 = vand.u32 %v563, 4294901760
      %656 = vmatpush1.msra.mxu0 %v655
      %v657 = vand.u32 %v566, 4294901760
      %658 = vmatprep.subr.mxu0 %v657
      %v659 = vand.u32 %v565, 4294901760
      %660 = vmatpush1.msra.mxu0 %v659
      %v661 = vand.u32 %v568, 4294901760
      %662 = vmatprep.subr.mxu0 %v661
      %v663 = vand.u32 %v567, 4294901760
      %664 = vmatpush1.msra.mxu0 %v663
      %v665 = vand.u32 %v570, 4294901760
      %666 = vmatprep.subr.mxu0 %v665
      %v667 = vand.u32 %v569, 4294901760
      %668 = vmatpush1.msra.mxu0 %v667
      %v669 = vand.u32 %v572, 4294901760
      %670 = vmatprep.subr.mxu0 %v669
      %v671 = vand.u32 %v571, 4294901760
      %672 = vmatpush1.msra.mxu0 %v671
      %v673 = vand.u32 %v574, 4294901760
      %674 = vmatprep.subr.mxu0 %v673
      %v675 = vand.u32 %v573, 4294901760
      %676 = vmatpush1.msra.mxu0 %v675
      %v677 = vand.u32 %v576, 4294901760
      %678 = vmatprep.subr.mxu0 %v677
      %v679 = vand.u32 %v575, 4294901760
      %680 = vmatpush1.msra.mxu0 %v679
      %v681 = vand.u32 %v578, 4294901760
      %682 = vmatprep.subr.mxu0 %v681
      %v683 = vand.u32 %v577, 4294901760
      %684 = vmatpush1.msra.mxu0 %v683
      %v685 = vand.u32 %v580, 4294901760
      %686 = vmatprep.subr.mxu0 %v685
      %v687 = vand.u32 %v579, 4294901760
      %688 = vmatpush1.msra.mxu0 %v687
      %v689 = vand.u32 %v582, 4294901760
      %690 = vmatprep.subr.mxu0 %v689
      %v691 = vand.u32 %v581, 4294901760
      %692 = vmatpush1.msra.mxu0 %v691
      %v693 = vand.u32 %v584, 4294901760
      %694 = vmatprep.subr.mxu0 %v693
      %v695 = vand.u32 %v583, 4294901760
      %696 = vmatpush1.msra.mxu0 %v695
      %v697 = vand.u32 %v586, 4294901760
      %698 = vmatprep.subr.mxu0 %v697
      %v699 = vand.u32 %v585, 4294901760
      %700 = vmatpush1.msra.mxu0 %v699
      %v701 = vand.u32 %v588, 4294901760
      %702 = vmatprep.subr.mxu0 %v701
      %v703 = vand.u32 %v587, 4294901760
      %704 = vmatpush1.msra.mxu0 %v703
      %v705 = vand.u32 %v590, 4294901760
      %706 = vmatprep.subr.mxu0 %v705
      %v707 = vand.u32 %v589, 4294901760
      %708 = vmatpush1.msra.mxu0 %v707
      %v709 = vand.u32 %v592, 4294901760
      %710 = vmatprep.subr.mxu0 %v709
      %v711 = vand.u32 %v591, 4294901760
      %712 = vmatpush1.msra.mxu0 %v711
      %v713 = vand.u32 %v594, 4294901760
      %714 = vmatprep.subr.mxu0 %v713
      %v715 = vand.u32 %v593, 4294901760
      %716 = vmatpush1.msra.mxu0 %v715
      %v717 = vand.u32 %v596, 4294901760
      %718 = vmatprep.subr.mxu0 %v717
      %v719 = vand.u32 %v595, 4294901760
      %720 = vmatpush1.msra.mxu0 %v719
      %v721 = vand.u32 %v598, 4294901760
      %722 = vmatprep.subr.mxu0 %v721
      %v723 = vand.u32 %v597, 4294901760
      %724 = vmatpush1.msra.mxu0 %v723
      %v725 = vand.u32 %v600, 4294901760
      %726 = vmatprep.subr.mxu0 %v725
      %v727 = vand.u32 %v599, 4294901760
      %728 = vmatpush1.msra.mxu0 %v727
      %v729 = vand.u32 %v486, 4294901760
      %v730 = vsub.f32 %v486, %v729
      %v731 = vand.u32 %v730, 4294901760
      %v732 = vsub.f32 %v730, %v731
      %v733 = vand.u32 %v732, 4294901760
      %734 = vmatprep.mubr.f32.mxu0 %v733
      %v735 = vand.u32 %v483, 4294901760
      %v736 = vsub.f32 %v483, %v735
      %v737 = vand.u32 %v736, 4294901760
      %v738 = vsub.f32 %v736, %v737
      %v739 = vand.u32 %v738, 4294901760
      %740 = vmatmul.mubr.f32.gmra.mrb[0].mxu0 %v739
      %v741 = vpop.f32.mrb[0].mxu0
      %v742 = vadd.f32 0.0, %v741
      %v743 = vpop.f32.mrb[0].mxu0
      %v744 = vadd.f32 0.0, %v743
      %v745 = vand.u32 %v490, 4294901760
      %v746 = vsub.f32 %v490, %v745
      %v747 = vand.u32 %v746, 4294901760
      %v748 = vsub.f32 %v746, %v747
      %v749 = vand.u32 %v748, 4294901760
      %750 = vmatprep.mubr.f32.mxu0 %v749
      %v751 = vand.u32 %v488, 4294901760
      %v752 = vsub.f32 %v488, %v751
      %v753 = vand.u32 %v752, 4294901760
      %v754 = vsub.f32 %v752, %v753
      %v755 = vand.u32 %v754, 4294901760
      %756 = vmatmul.mubr.f32.gmra.mrb[0].mxu0 %v755
      %v757 = vpop.f32.mrb[0].mxu0
      %v758 = vadd.f32 0.0, %v757
      %v759 = vpop.f32.mrb[0].mxu0
      %v760 = vadd.f32 0.0, %v759
      %v761 = vand.u32 %v496, 4294901760
      %v762 = vsub.f32 %v496, %v761
      %v763 = vand.u32 %v762, 4294901760
      %v764 = vsub.f32 %v762, %v763
      %v765 = vand.u32 %v764, 4294901760
      %766 = vmatprep.mubr.f32.mxu0 %v765
      %v767 = vand.u32 %v493, 4294901760
      %v768 = vsub.f32 %v493, %v767
      %v769 = vand.u32 %v768, 4294901760
      %v770 = vsub.f32 %v768, %v769
      %v771 = vand.u32 %v770, 4294901760
      %772 = vmatmul.mubr.f32.gmra.mrb[0].mxu0 %v771
      %v773 = vpop.f32.mrb[0].mxu0
      %v774 = vadd.f32 0.0, %v773
      %v775 = vpop.f32.mrb[0].mxu0
      %v776 = vadd.f32 0.0, %v775
      %v777 = vand.u32 %v500, 4294901760
      %v778 = vsub.f32 %v500, %v777
      %v779 = vand.u32 %v778, 4294901760
      %v780 = vsub.f32 %v778, %v779
      %v781 = vand.u32 %v780, 4294901760
      %782 = vmatprep.mubr.f32.mxu0 %v781
      %v783 = vand.u32 %v498, 4294901760
      %v784 = vsub.f32 %v498, %v783
      %v785 = vand.u32 %v784, 4294901760
      %v786 = vsub.f32 %v784, %v785
      %v787 = vand.u32 %v786, 4294901760
      %788 = vmatmul.mubr.f32.gmra.mrb[0].mxu0 %v787
      %v789 = vpop.f32.mrb[0].mxu0
      %v790 = vadd.f32 0.0, %v789
      %v791 = vpop.f32.mrb[0].mxu0
      %v792 = vadd.f32 0.0, %v791
      %v793 = vand.u32 %v506, 4294901760
      %v794 = vsub.f32 %v506, %v793
      %v795 = vand.u32 %v794, 4294901760
      %v796 = vsub.f32 %v794, %v795
      %v797 = vand.u32 %v796, 4294901760
      %798 = vmatprep.mubr.f32.mxu0 %v797
      %v799 = vand.u32 %v503, 4294901760
      %v800 = vsub.f32 %v503, %v799
      %v801 = vand.u32 %v800, 4294901760
      %v802 = vsub.f32 %v800, %v801
      %v803 = vand.u32 %v802, 4294901760
      %804 = vmatmul.mubr.f32.gmra.mrb[0].mxu0 %v803
      %v805 = vpop.f32.mrb[0].mxu0
      %v806 = vadd.f32 0.0, %v805
      %v807 = vpop.f32.mrb[0].mxu0
      %v808 = vadd.f32 0.0, %v807
      %v809 = vand.u32 %v510, 4294901760
      %v810 = vsub.f32 %v510, %v809
      %v811 = vand.u32 %v810, 4294901760
      %v812 = vsub.f32 %v810, %v811
      %v813 = vand.u32 %v812, 4294901760
      %814 = vmatprep.mubr.f32.mxu0 %v813
      %v815 = vand.u32 %v508, 4294901760
      %v816 = vsub.f32 %v508, %v815
      %v817 = vand.u32 %v816, 4294901760
      %v818 = vsub.f32 %v816, %v817
      %v819 = vand.u32 %v818, 4294901760
      %820 = vmatmul.mubr.f32.gmra.mrb[0].mxu0 %v819
      %v821 = vpop.f32.mrb[0].mxu0
      %v822 = vadd.f32 0.0, %v821
      %v823 = vpop.f32.mrb[0].mxu0
      %v824 = vadd.f32 0.0, %v823
      %v825 = vand.u32 %v516, 4294901760
      %v826 = vsub.f32 %v516, %v825
      %v827 = vand.u32 %v826, 4294901760
      %v828 = vsub.f32 %v826, %v827
      %v829 = vand.u32 %v828, 4294901760
      %830 = vmatprep.mubr.f32.mxu0 %v829
      %v831 = vand.u32 %v513, 4294901760
      %v832 = vsub.f32 %v513, %v831
      %v833 = vand.u32 %v832, 4294901760
      %v834 = vsub.f32 %v832, %v833
      %v835 = vand.u32 %v834, 4294901760
      %836 = vmatmul.mubr.f32.gmra.mrb[0].mxu0 %v835
      %v837 = vpop.f32.mrb[0].mxu0
      %v838 = vadd.f32 0.0, %v837
      %v839 = vpop.f32.mrb[0].mxu0
      %v840 = vadd.f32 0.0, %v839
      %v841 = vand.u32 %v520, 4294901760
      %v842 = vsub.f32 %v520, %v841
      %v843 = vand.u32 %v842, 4294901760
      %v844 = vsub.f32 %v842, %v843
      %v845 = vand.u32 %v844, 4294901760
      %846 = vmatprep.mubr.f32.mxu0 %v845
      %v847 = vand.u32 %v518, 4294901760
      %v848 = vsub.f32 %v518, %v847
      %v849 = vand.u32 %v848, 4294901760
      %v850 = vsub.f32 %v848, %v849
      %v851 = vand.u32 %v850, 4294901760
      %852 = vmatmul.mubr.f32.gmra.mrb[0].mxu0 %v851
      %v853 = vpop.f32.mrb[0].mxu0
      %v854 = vadd.f32 0.0, %v853
      %v855 = vpop.f32.mrb[0].mxu0
      %v856 = vadd.f32 0.0, %v855
      %857 = vdwg.mxu0
      %v858 = vand.u32 %v538, 4294901760
      %v859 = vsub.f32 %v538, %v858
      %v860 = vand.u32 %v859, 4294901760
      %v861 = vsub.f32 %v859, %v860
      %v862 = vand.u32 %v861, 4294901760
      %863 = vmatprep.subr.mxu0 %v862
      %v864 = vand.u32 %v537, 4294901760
      %v865 = vsub.f32 %v537, %v864
      %v866 = vand.u32 %v865, 4294901760
      %v867 = vsub.f32 %v865, %v866
      %v868 = vand.u32 %v867, 4294901760
      %869 = vmatpush1.msra.mxu0 %v868
      %v870 = vand.u32 %v540, 4294901760
      %v871 = vsub.f32 %v540, %v870
      %v872 = vand.u32 %v871, 4294901760
      %v873 = vsub.f32 %v871, %v872
      %v874 = vand.u32 %v873, 4294901760
      %875 = vmatprep.subr.mxu0 %v874
      %v876 = vand.u32 %v539, 4294901760
      %v877 = vsub.f32 %v539, %v876
      %v878 = vand.u32 %v877, 4294901760
      %v879 = vsub.f32 %v877, %v878
      %v880 = vand.u32 %v879, 4294901760
      %881 = vmatpush1.msra.mxu0 %v880
      %v882 = vand.u32 %v542, 4294901760
      %v883 = vsub.f32 %v542, %v882
      %v884 = vand.u32 %v883, 4294901760
      %v885 = vsub.f32 %v883, %v884
      %v886 = vand.u32 %v885, 4294901760
      %887 = vmatprep.subr.mxu0 %v886
      %v888 = vand.u32 %v541, 4294901760
      %v889 = vsub.f32 %v541, %v888
      %v890 = vand.u32 %v889, 4294901760
      %v891 = vsub.f32 %v889, %v890
      %v892 = vand.u32 %v891, 4294901760
      %893 = vmatpush1.msra.mxu0 %v892
      %v894 = vand.u32 %v544, 4294901760
      %v895 = vsub.f32 %v544, %v894
      %v896 = vand.u32 %v895, 4294901760
      %v897 = vsub.f32 %v895, %v896
      %v898 = vand.u32 %v897, 4294901760
      %899 = vmatprep.subr.mxu0 %v898
      %v900 = vand.u32 %v543, 4294901760
      %v901 = vsub.f32 %v543, %v900
      %v902 = vand.u32 %v901, 4294901760
      %v903 = vsub.f32 %v901, %v902
      %v904 = vand.u32 %v903, 4294901760
      %905 = vmatpush1.msra.mxu0 %v904
      %v906 = vand.u32 %v546, 4294901760
      %v907 = vsub.f32 %v546, %v906
      %v908 = vand.u32 %v907, 4294901760
      %v909 = vsub.f32 %v907, %v908
      %v910 = vand.u32 %v909, 4294901760
      %911 = vmatprep.subr.mxu0 %v910
      %v912 = vand.u32 %v545, 4294901760
      %v913 = vsub.f32 %v545, %v912
      %v914 = vand.u32 %v913, 4294901760
      %v915 = vsub.f32 %v913, %v914
      %v916 = vand.u32 %v915, 4294901760
      %917 = vmatpush1.msra.mxu0 %v916
      %v918 = vand.u32 %v548, 4294901760
      %v919 = vsub.f32 %v548, %v918
      %v920 = vand.u32 %v919, 4294901760
      %v921 = vsub.f32 %v919, %v920
      %v922 = vand.u32 %v921, 4294901760
      %923 = vmatprep.subr.mxu0 %v922
      %v924 = vand.u32 %v547, 4294901760
      %v925 = vsub.f32 %v547, %v924
      %v926 = vand.u32 %v925, 4294901760
      %v927 = vsub.f32 %v925, %v926
      %v928 = vand.u32 %v927, 4294901760
      %929 = vmatpush1.msra.mxu0 %v928
      %v930 = vand.u32 %v550, 4294901760
      %v931 = vsub.f32 %v550, %v930
      %v932 = vand.u32 %v931, 4294901760
      %v933 = vsub.f32 %v931, %v932
      %v934 = vand.u32 %v933, 4294901760
      %935 = vmatprep.subr.mxu0 %v934
      %v936 = vand.u32 %v549, 4294901760
      %v937 = vsub.f32 %v549, %v936
      %v938 = vand.u32 %v937, 4294901760
      %v939 = vsub.f32 %v937, %v938
      %v940 = vand.u32 %v939, 4294901760
      %941 = vmatpush1.msra.mxu0 %v940
      %v942 = vand.u32 %v552, 4294901760
      %v943 = vsub.f32 %v552, %v942
      %v944 = vand.u32 %v943, 4294901760
      %v945 = vsub.f32 %v943, %v944
      %v946 = vand.u32 %v945, 4294901760
      %947 = vmatprep.subr.mxu0 %v946
      %v948 = vand.u32 %v551, 4294901760
      %v949 = vsub.f32 %v551, %v948
      %v950 = vand.u32 %v949, 4294901760
      %v951 = vsub.f32 %v949, %v950
      %v952 = vand.u32 %v951, 4294901760
      %953 = vmatpush1.msra.mxu0 %v952
      %v954 = vand.u32 %v554, 4294901760
      %v955 = vsub.f32 %v554, %v954
      %v956 = vand.u32 %v955, 4294901760
      %v957 = vsub.f32 %v955, %v956
      %v958 = vand.u32 %v957, 4294901760
      %959 = vmatprep.subr.mxu0 %v958
      %v960 = vand.u32 %v553, 4294901760
      %v961 = vsub.f32 %v553, %v960
      %v962 = vand.u32 %v961, 4294901760
      %v963 = vsub.f32 %v961, %v962
      %v964 = vand.u32 %v963, 4294901760
      %965 = vmatpush1.msra.mxu0 %v964
      %v966 = vand.u32 %v556, 4294901760
      %v967 = vsub.f32 %v556, %v966
      %v968 = vand.u32 %v967, 4294901760
      %v969 = vsub.f32 %v967, %v968
      %v970 = vand.u32 %v969, 4294901760
      %971 = vmatprep.subr.mxu0 %v970
      %v972 = vand.u32 %v555, 4294901760
      %v973 = vsub.f32 %v555, %v972
      %v974 = vand.u32 %v973, 4294901760
      %v975 = vsub.f32 %v973, %v974
      %v976 = vand.u32 %v975, 4294901760
      %977 = vmatpush1.msra.mxu0 %v976
      %v978 = vand.u32 %v558, 4294901760
      %v979 = vsub.f32 %v558, %v978
      %v980 = vand.u32 %v979, 4294901760
      %v981 = vsub.f32 %v979, %v980
      %v982 = vand.u32 %v981, 4294901760
      %983 = vmatprep.subr.mxu0 %v982
      %v984 = vand.u32 %v557, 4294901760
      %v985 = vsub.f32 %v557, %v984
      %v986 = vand.u32 %v985, 4294901760
      %v987 = vsub.f32 %v985, %v986
      %v988 = vand.u32 %v987, 4294901760
      %989 = vmatpush1.msra.mxu0 %v988
      %v990 = vand.u32 %v560, 4294901760
      %v991 = vsub.f32 %v560, %v990
      %v992 = vand.u32 %v991, 4294901760
      %v993 = vsub.f32 %v991, %v992
      %v994 = vand.u32 %v993, 4294901760
      %995 = vmatprep.subr.mxu0 %v994
      %v996 = vand.u32 %v559, 4294901760
      %v997 = vsub.f32 %v559, %v996
      %v998 = vand.u32 %v997, 4294901760
      %v999 = vsub.f32 %v997, %v998
      %v1000 = vand.u32 %v999, 4294901760
      %1001 = vmatpush1.msra.mxu0 %v1000
      %v1002 = vand.u32 %v562, 4294901760
      %v1003 = vsub.f32 %v562, %v1002
      %v1004 = vand.u32 %v1003, 4294901760
      %v1005 = vsub.f32 %v1003, %v1004
      %v1006 = vand.u32 %v1005, 4294901760
      %1007 = vmatprep.subr.mxu0 %v1006
      %v1008 = vand.u32 %v561, 4294901760
      %v1009 = vsub.f32 %v561, %v1008
      %v1010 = vand.u32 %v1009, 4294901760
      %v1011 = vsub.f32 %v1009, %v1010
      %v1012 = vand.u32 %v1011, 4294901760
      %1013 = vmatpush1.msra.mxu0 %v1012
      %v1014 = vand.u32 %v564, 4294901760
      %v1015 = vsub.f32 %v564, %v1014
      %v1016 = vand.u32 %v1015, 4294901760
      %v1017 = vsub.f32 %v1015, %v1016
      %v1018 = vand.u32 %v1017, 4294901760
      %1019 = vmatprep.subr.mxu0 %v1018
      %v1020 = vand.u32 %v563, 4294901760
      %v1021 = vsub.f32 %v563, %v1020
      %v1022 = vand.u32 %v1021, 4294901760
      %v1023 = vsub.f32 %v1021, %v1022
      %v1024 = vand.u32 %v1023, 4294901760
      %1025 = vmatpush1.msra.mxu0 %v1024
      %v1026 = vand.u32 %v566, 4294901760
      %v1027 = vsub.f32 %v566, %v1026
      %v1028 = vand.u32 %v1027, 4294901760
      %v1029 = vsub.f32 %v1027, %v1028
      %v1030 = vand.u32 %v1029, 4294901760
      %1031 = vmatprep.subr.mxu0 %v1030
      %v1032 = vand.u32 %v565, 4294901760
      %v1033 = vsub.f32 %v565, %v1032
      %v1034 = vand.u32 %v1033, 4294901760
      %v1035 = vsub.f32 %v1033, %v1034
      %v1036 = vand.u32 %v1035, 4294901760
      %1037 = vmatpush1.msra.mxu0 %v1036
      %v1038 = vand.u32 %v568, 4294901760
      %v1039 = vsub.f32 %v568, %v1038
      %v1040 = vand.u32 %v1039, 4294901760
      %v1041 = vsub.f32 %v1039, %v1040
      %v1042 = vand.u32 %v1041, 4294901760
      %1043 = vmatprep.subr.mxu0 %v1042
      %v1044 = vand.u32 %v567, 4294901760
      %v1045 = vsub.f32 %v567, %v1044
      %v1046 = vand.u32 %v1045, 4294901760
      %v1047 = vsub.f32 %v1045, %v1046
      %v1048 = vand.u32 %v1047, 4294901760
      %1049 = vmatpush1.msra.mxu0 %v1048
      %v1050 = vand.u32 %v570, 4294901760
      %v1051 = vsub.f32 %v570, %v1050
      %v1052 = vand.u32 %v1051, 4294901760
      %v1053 = vsub.f32 %v1051, %v1052
      %v1054 = vand.u32 %v1053, 4294901760
      %1055 = vmatprep.subr.mxu0 %v1054
      %v1056 = vand.u32 %v569, 4294901760
      %v1057 = vsub.f32 %v569, %v1056
      %v1058 = vand.u32 %v1057, 4294901760
      %v1059 = vsub.f32 %v1057, %v1058
      %v1060 = vand.u32 %v1059, 4294901760
      %1061 = vmatpush1.msra.mxu0 %v1060
      %v1062 = vand.u32 %v572, 4294901760
      %v1063 = vsub.f32 %v572, %v1062
      %v1064 = vand.u32 %v1063, 4294901760
      %v1065 = vsub.f32 %v1063, %v1064
      %v1066 = vand.u32 %v1065, 4294901760
      %1067 = vmatprep.subr.mxu0 %v1066
      %v1068 = vand.u32 %v571, 4294901760
      %v1069 = vsub.f32 %v571, %v1068
      %v1070 = vand.u32 %v1069, 4294901760
      %v1071 = vsub.f32 %v1069, %v1070
      %v1072 = vand.u32 %v1071, 4294901760
      %1073 = vmatpush1.msra.mxu0 %v1072
      %v1074 = vand.u32 %v574, 4294901760
      %v1075 = vsub.f32 %v574, %v1074
      %v1076 = vand.u32 %v1075, 4294901760
      %v1077 = vsub.f32 %v1075, %v1076
      %v1078 = vand.u32 %v1077, 4294901760
      %1079 = vmatprep.subr.mxu0 %v1078
      %v1080 = vand.u32 %v573, 4294901760
      %v1081 = vsub.f32 %v573, %v1080
      %v1082 = vand.u32 %v1081, 4294901760
      %v1083 = vsub.f32 %v1081, %v1082
      %v1084 = vand.u32 %v1083, 4294901760
      %1085 = vmatpush1.msra.mxu0 %v1084
      %v1086 = vand.u32 %v576, 4294901760
      %v1087 = vsub.f32 %v576, %v1086
      %v1088 = vand.u32 %v1087, 4294901760
      %v1089 = vsub.f32 %v1087, %v1088
      %v1090 = vand.u32 %v1089, 4294901760
      %1091 = vmatprep.subr.mxu0 %v1090
      %v1092 = vand.u32 %v575, 4294901760
      %v1093 = vsub.f32 %v575, %v1092
      %v1094 = vand.u32 %v1093, 4294901760
      %v1095 = vsub.f32 %v1093, %v1094
      %v1096 = vand.u32 %v1095, 4294901760
      %1097 = vmatpush1.msra.mxu0 %v1096
      %v1098 = vand.u32 %v578, 4294901760
      %v1099 = vsub.f32 %v578, %v1098
      %v1100 = vand.u32 %v1099, 4294901760
      %v1101 = vsub.f32 %v1099, %v1100
      %v1102 = vand.u32 %v1101, 4294901760
      %1103 = vmatprep.subr.mxu0 %v1102
      %v1104 = vand.u32 %v577, 4294901760
      %v1105 = vsub.f32 %v577, %v1104
      %v1106 = vand.u32 %v1105, 4294901760
      %v1107 = vsub.f32 %v1105, %v1106
      %v1108 = vand.u32 %v1107, 4294901760
      %1109 = vmatpush1.msra.mxu0 %v1108
      %v1110 = vand.u32 %v580, 4294901760
      %v1111 = vsub.f32 %v580, %v1110
      %v1112 = vand.u32 %v1111, 4294901760
      %v1113 = vsub.f32 %v1111, %v1112
      %v1114 = vand.u32 %v1113, 4294901760
      %1115 = vmatprep.subr.mxu0 %v1114
      %v1116 = vand.u32 %v579, 4294901760
      %v1117 = vsub.f32 %v579, %v1116
      %v1118 = vand.u32 %v1117, 4294901760
      %v1119 = vsub.f32 %v1117, %v1118
      %v1120 = vand.u32 %v1119, 4294901760
      %1121 = vmatpush1.msra.mxu0 %v1120
      %v1122 = vand.u32 %v582, 4294901760
      %v1123 = vsub.f32 %v582, %v1122
      %v1124 = vand.u32 %v1123, 4294901760
      %v1125 = vsub.f32 %v1123, %v1124
      %v1126 = vand.u32 %v1125, 4294901760
      %1127 = vmatprep.subr.mxu0 %v1126
      %v1128 = vand.u32 %v581, 4294901760
      %v1129 = vsub.f32 %v581, %v1128
      %v1130 = vand.u32 %v1129, 4294901760
      %v1131 = vsub.f32 %v1129, %v1130
      %v1132 = vand.u32 %v1131, 4294901760
      %1133 = vmatpush1.msra.mxu0 %v1132
      %v1134 = vand.u32 %v584, 4294901760
      %v1135 = vsub.f32 %v584, %v1134
      %v1136 = vand.u32 %v1135, 4294901760
      %v1137 = vsub.f32 %v1135, %v1136
      %v1138 = vand.u32 %v1137, 4294901760
      %1139 = vmatprep.subr.mxu0 %v1138
      %v1140 = vand.u32 %v583, 4294901760
      %v1141 = vsub.f32 %v583, %v1140
      %v1142 = vand.u32 %v1141, 4294901760
      %v1143 = vsub.f32 %v1141, %v1142
      %v1144 = vand.u32 %v1143, 4294901760
      %1145 = vmatpush1.msra.mxu0 %v1144
      %v1146 = vand.u32 %v586, 4294901760
      %v1147 = vsub.f32 %v586, %v1146
      %v1148 = vand.u32 %v1147, 4294901760
      %v1149 = vsub.f32 %v1147, %v1148
      %v1150 = vand.u32 %v1149, 4294901760
      %1151 = vmatprep.subr.mxu0 %v1150
      %v1152 = vand.u32 %v585, 4294901760
      %v1153 = vsub.f32 %v585, %v1152
      %v1154 = vand.u32 %v1153, 4294901760
      %v1155 = vsub.f32 %v1153, %v1154
      %v1156 = vand.u32 %v1155, 4294901760
      %1157 = vmatpush1.msra.mxu0 %v1156
      %v1158 = vand.u32 %v588, 4294901760
      %v1159 = vsub.f32 %v588, %v1158
      %v1160 = vand.u32 %v1159, 4294901760
      %v1161 = vsub.f32 %v1159, %v1160
      %v1162 = vand.u32 %v1161, 4294901760
      %1163 = vmatprep.subr.mxu0 %v1162
      %v1164 = vand.u32 %v587, 4294901760
      %v1165 = vsub.f32 %v587, %v1164
      %v1166 = vand.u32 %v1165, 4294901760
      %v1167 = vsub.f32 %v1165, %v1166
      %v1168 = vand.u32 %v1167, 4294901760
      %1169 = vmatpush1.msra.mxu0 %v1168
      %v1170 = vand.u32 %v590, 4294901760
      %v1171 = vsub.f32 %v590, %v1170
      %v1172 = vand.u32 %v1171, 4294901760
      %v1173 = vsub.f32 %v1171, %v1172
      %v1174 = vand.u32 %v1173, 4294901760
      %1175 = vmatprep.subr.mxu0 %v1174
      %v1176 = vand.u32 %v589, 4294901760
      %v1177 = vsub.f32 %v589, %v1176
      %v1178 = vand.u32 %v1177, 4294901760
      %v1179 = vsub.f32 %v1177, %v1178
      %v1180 = vand.u32 %v1179, 4294901760
      %1181 = vmatpush1.msra.mxu0 %v1180
      %v1182 = vand.u32 %v592, 4294901760
      %v1183 = vsub.f32 %v592, %v1182
      %v1184 = vand.u32 %v1183, 4294901760
      %v1185 = vsub.f32 %v1183, %v1184
      %v1186 = vand.u32 %v1185, 4294901760
      %1187 = vmatprep.subr.mxu0 %v1186
      %v1188 = vand.u32 %v591, 4294901760
      %v1189 = vsub.f32 %v591, %v1188
      %v1190 = vand.u32 %v1189, 4294901760
      %v1191 = vsub.f32 %v1189, %v1190
      %v1192 = vand.u32 %v1191, 4294901760
      %1193 = vmatpush1.msra.mxu0 %v1192
      %v1194 = vand.u32 %v594, 4294901760
      %v1195 = vsub.f32 %v594, %v1194
      %v1196 = vand.u32 %v1195, 4294901760
      %v1197 = vsub.f32 %v1195, %v1196
      %v1198 = vand.u32 %v1197, 4294901760
      %1199 = vmatprep.subr.mxu0 %v1198
      %v1200 = vand.u32 %v593, 4294901760
      %v1201 = vsub.f32 %v593, %v1200
      %v1202 = vand.u32 %v1201, 4294901760
      %v1203 = vsub.f32 %v1201, %v1202
      %v1204 = vand.u32 %v1203, 4294901760
      %1205 = vmatpush1.msra.mxu0 %v1204
      %v1206 = vand.u32 %v596, 4294901760
      %v1207 = vsub.f32 %v596, %v1206
      %v1208 = vand.u32 %v1207, 4294901760
      %v1209 = vsub.f32 %v1207, %v1208
      %v1210 = vand.u32 %v1209, 4294901760
      %1211 = vmatprep.subr.mxu0 %v1210
      %v1212 = vand.u32 %v595, 4294901760
      %v1213 = vsub.f32 %v595, %v1212
      %v1214 = vand.u32 %v1213, 4294901760
      %v1215 = vsub.f32 %v1213, %v1214
      %v1216 = vand.u32 %v1215, 4294901760
      %1217 = vmatpush1.msra.mxu0 %v1216
      %v1218 = vand.u32 %v598, 4294901760
      %v1219 = vsub.f32 %v598, %v1218
      %v1220 = vand.u32 %v1219, 4294901760
      %v1221 = vsub.f32 %v1219, %v1220
      %v1222 = vand.u32 %v1221, 4294901760
      %1223 = vmatprep.subr.mxu0 %v1222
      %v1224 = vand.u32 %v597, 4294901760
      %v1225 = vsub.f32 %v597, %v1224
      %v1226 = vand.u32 %v1225, 4294901760
      %v1227 = vsub.f32 %v1225, %v1226
      %v1228 = vand.u32 %v1227, 4294901760
      %1229 = vmatpush1.msra.mxu0 %v1228
      %v1230 = vand.u32 %v600, 4294901760
      %v1231 = vsub.f32 %v600, %v1230
      %v1232 = vand.u32 %v1231, 4294901760
      %v1233 = vsub.f32 %v1231, %v1232
      %v1234 = vand.u32 %v1233, 4294901760
      %1235 = vmatprep.subr.mxu0 %v1234
      %v1236 = vand.u32 %v599, 4294901760
      %v1237 = vsub.f32 %v599, %v1236
      %v1238 = vand.u32 %v1237, 4294901760
      %v1239 = vsub.f32 %v1237, %v1238
      %v1240 = vand.u32 %v1239, 4294901760
      %1241 = vmatpush1.msra.mxu0 %v1240
      %v1242 = vand.u32 %v486, 4294901760
      %1243 = vmatprep.mubr.f32.mxu0 %v1242
      %v1244 = vand.u32 %v483, 4294901760
      %1245 = vmatmul.mubr.f32.gmra.mrb[0].mxu0 %v1244
      %v1246 = vpop.f32.mrb[0].mxu0
      %v1247 = vadd.f32 %v742, %v1246
      %v1248 = vpop.f32.mrb[0].mxu0
      %v1249 = vadd.f32 %v744, %v1248
      %v1250 = vand.u32 %v490, 4294901760
      %1251 = vmatprep.mubr.f32.mxu0 %v1250
      %v1252 = vand.u32 %v488, 4294901760
      %1253 = vmatmul.mubr.f32.gmra.mrb[0].mxu0 %v1252
      %v1254 = vpop.f32.mrb[0].mxu0
      %v1255 = vadd.f32 %v758, %v1254
      %v1256 = vpop.f32.mrb[0].mxu0
      %v1257 = vadd.f32 %v760, %v1256
      %v1258 = vand.u32 %v496, 4294901760
      %1259 = vmatprep.mubr.f32.mxu0 %v1258
      %v1260 = vand.u32 %v493, 4294901760
      %1261 = vmatmul.mubr.f32.gmra.mrb[0].mxu0 %v1260
      %v1262 = vpop.f32.mrb[0].mxu0
      %v1263 = vadd.f32 %v774, %v1262
      %v1264 = vpop.f32.mrb[0].mxu0
      %v1265 = vadd.f32 %v776, %v1264
      %v1266 = vand.u32 %v500, 4294901760
      %1267 = vmatprep.mubr.f32.mxu0 %v1266
      %v1268 = vand.u32 %v498, 4294901760
      %1269 = vmatmul.mubr.f32.gmra.mrb[0].mxu0 %v1268
      %v1270 = vpop.f32.mrb[0].mxu0
      %v1271 = vadd.f32 %v790, %v1270
      %v1272 = vpop.f32.mrb[0].mxu0
      %v1273 = vadd.f32 %v792, %v1272
      %v1274 = vand.u32 %v506, 4294901760
      %1275 = vmatprep.mubr.f32.mxu0 %v1274
      %v1276 = vand.u32 %v503, 4294901760
      %1277 = vmatmul.mubr.f32.gmra.mrb[0].mxu0 %v1276
      %v1278 = vpop.f32.mrb[0].mxu0
      %v1279 = vadd.f32 %v806, %v1278
      %v1280 = vpop.f32.mrb[0].mxu0
      %v1281 = vadd.f32 %v808, %v1280
      %v1282 = vand.u32 %v510, 4294901760
      %1283 = vmatprep.mubr.f32.mxu0 %v1282
      %v1284 = vand.u32 %v508, 4294901760
      %1285 = vmatmul.mubr.f32.gmra.mrb[0].mxu0 %v1284
      %v1286 = vpop.f32.mrb[0].mxu0
      %v1287 = vadd.f32 %v822, %v1286
      %v1288 = vpop.f32.mrb[0].mxu0
      %v1289 = vadd.f32 %v824, %v1288
      %v1290 = vand.u32 %v516, 4294901760
      %1291 = vmatprep.mubr.f32.mxu0 %v1290
      %v1292 = vand.u32 %v513, 4294901760
      %1293 = vmatmul.mubr.f32.gmra.mrb[0].mxu0 %v1292
      %v1294 = vpop.f32.mrb[0].mxu0
      %v1295 = vadd.f32 %v838, %v1294
      %v1296 = vpop.f32.mrb[0].mxu0
      %v1297 = vadd.f32 %v840, %v1296
      %v1298 = vand.u32 %v520, 4294901760
      %1299 = vmatprep.mubr.f32.mxu0 %v1298
      %v1300 = vand.u32 %v518, 4294901760
      %1301 = vmatmul.mubr.f32.gmra.mrb[0].mxu0 %v1300
      %v1302 = vpop.f32.mrb[0].mxu0
      %v1303 = vadd.f32 %v854, %v1302
      %v1304 = vpop.f32.mrb[0].mxu0
      %v1305 = vadd.f32 %v856, %v1304
      %1306 = vdwg.mxu0
      %v1307 = vand.u32 %v538, 4294901760
      %v1308 = vsub.f32 %v538, %v1307
      %1309 = vmatprep.subr.mxu0 %v1308
      %v1310 = vand.u32 %v537, 4294901760
      %v1311 = vsub.f32 %v537, %v1310
      %1312 = vmatpush1.msra.mxu0 %v1311
      %v1313 = vand.u32 %v540, 4294901760
      %v1314 = vsub.f32 %v540, %v1313
      %1315 = vmatprep.subr.mxu0 %v1314
      %v1316 = vand.u32 %v539, 4294901760
      %v1317 = vsub.f32 %v539, %v1316
      %1318 = vmatpush1.msra.mxu0 %v1317
      %v1319 = vand.u32 %v542, 4294901760
      %v1320 = vsub.f32 %v542, %v1319
      %1321 = vmatprep.subr.mxu0 %v1320
      %v1322 = vand.u32 %v541, 4294901760
      %v1323 = vsub.f32 %v541, %v1322
      %1324 = vmatpush1.msra.mxu0 %v1323
      %v1325 = vand.u32 %v544, 4294901760
      %v1326 = vsub.f32 %v544, %v1325
      %1327 = vmatprep.subr.mxu0 %v1326
      %v1328 = vand.u32 %v543, 4294901760
      %v1329 = vsub.f32 %v543, %v1328
      %1330 = vmatpush1.msra.mxu0 %v1329
      %v1331 = vand.u32 %v546, 4294901760
      %v1332 = vsub.f32 %v546, %v1331
      %1333 = vmatprep.subr.mxu0 %v1332
      %v1334 = vand.u32 %v545, 4294901760
      %v1335 = vsub.f32 %v545, %v1334
      %1336 = vmatpush1.msra.mxu0 %v1335
      %v1337 = vand.u32 %v548, 4294901760
      %v1338 = vsub.f32 %v548, %v1337
      %1339 = vmatprep.subr.mxu0 %v1338
      %v1340 = vand.u32 %v547, 4294901760
      %v1341 = vsub.f32 %v547, %v1340
      %1342 = vmatpush1.msra.mxu0 %v1341
      %v1343 = vand.u32 %v550, 4294901760
      %v1344 = vsub.f32 %v550, %v1343
      %1345 = vmatprep.subr.mxu0 %v1344
      %v1346 = vand.u32 %v549, 4294901760
      %v1347 = vsub.f32 %v549, %v1346
      %1348 = vmatpush1.msra.mxu0 %v1347
      %v1349 = vand.u32 %v552, 4294901760
      %v1350 = vsub.f32 %v552, %v1349
      %1351 = vmatprep.subr.mxu0 %v1350
      %v1352 = vand.u32 %v551, 4294901760
      %v1353 = vsub.f32 %v551, %v1352
      %1354 = vmatpush1.msra.mxu0 %v1353
      %v1355 = vand.u32 %v554, 4294901760
      %v1356 = vsub.f32 %v554, %v1355
      %1357 = vmatprep.subr.mxu0 %v1356
      %v1358 = vand.u32 %v553, 4294901760
      %v1359 = vsub.f32 %v553, %v1358
      %1360 = vmatpush1.msra.mxu0 %v1359
      %v1361 = vand.u32 %v556, 4294901760
      %v1362 = vsub.f32 %v556, %v1361
      %1363 = vmatprep.subr.mxu0 %v1362
      %v1364 = vand.u32 %v555, 4294901760
      %v1365 = vsub.f32 %v555, %v1364
      %1366 = vmatpush1.msra.mxu0 %v1365
      %v1367 = vand.u32 %v558, 4294901760
      %v1368 = vsub.f32 %v558, %v1367
      %1369 = vmatprep.subr.mxu0 %v1368
      %v1370 = vand.u32 %v557, 4294901760
      %v1371 = vsub.f32 %v557, %v1370
      %1372 = vmatpush1.msra.mxu0 %v1371
      %v1373 = vand.u32 %v560, 4294901760
      %v1374 = vsub.f32 %v560, %v1373
      %1375 = vmatprep.subr.mxu0 %v1374
      %v1376 = vand.u32 %v559, 4294901760
      %v1377 = vsub.f32 %v559, %v1376
      %1378 = vmatpush1.msra.mxu0 %v1377
      %v1379 = vand.u32 %v562, 4294901760
      %v1380 = vsub.f32 %v562, %v1379
      %1381 = vmatprep.subr.mxu0 %v1380
      %v1382 = vand.u32 %v561, 4294901760
      %v1383 = vsub.f32 %v561, %v1382
      %1384 = vmatpush1.msra.mxu0 %v1383
      %v1385 = vand.u32 %v564, 4294901760
      %v1386 = vsub.f32 %v564, %v1385
      %1387 = vmatprep.subr.mxu0 %v1386
      %v1388 = vand.u32 %v563, 4294901760
      %v1389 = vsub.f32 %v563, %v1388
      %1390 = vmatpush1.msra.mxu0 %v1389
      %v1391 = vand.u32 %v566, 4294901760
      %v1392 = vsub.f32 %v566, %v1391
      %1393 = vmatprep.subr.mxu0 %v1392
      %v1394 = vand.u32 %v565, 4294901760
      %v1395 = vsub.f32 %v565, %v1394
      %1396 = vmatpush1.msra.mxu0 %v1395
      %v1397 = vand.u32 %v568, 4294901760
      %v1398 = vsub.f32 %v568, %v1397
      %1399 = vmatprep.subr.mxu0 %v1398
      %v1400 = vand.u32 %v567, 4294901760
      %v1401 = vsub.f32 %v567, %v1400
      %1402 = vmatpush1.msra.mxu0 %v1401
      %v1403 = vand.u32 %v570, 4294901760
      %v1404 = vsub.f32 %v570, %v1403
      %1405 = vmatprep.subr.mxu0 %v1404
      %v1406 = vand.u32 %v569, 4294901760
      %v1407 = vsub.f32 %v569, %v1406
      %1408 = vmatpush1.msra.mxu0 %v1407
      %v1409 = vand.u32 %v572, 4294901760
      %v1410 = vsub.f32 %v572, %v1409
      %1411 = vmatprep.subr.mxu0 %v1410
      %v1412 = vand.u32 %v571, 4294901760
      %v1413 = vsub.f32 %v571, %v1412
      %1414 = vmatpush1.msra.mxu0 %v1413
      %v1415 = vand.u32 %v574, 4294901760
      %v1416 = vsub.f32 %v574, %v1415
      %1417 = vmatprep.subr.mxu0 %v1416
      %v1418 = vand.u32 %v573, 4294901760
      %v1419 = vsub.f32 %v573, %v1418
      %1420 = vmatpush1.msra.mxu0 %v1419
      %v1421 = vand.u32 %v576, 4294901760
      %v1422 = vsub.f32 %v576, %v1421
      %1423 = vmatprep.subr.mxu0 %v1422
      %v1424 = vand.u32 %v575, 4294901760
      %v1425 = vsub.f32 %v575, %v1424
      %1426 = vmatpush1.msra.mxu0 %v1425
      %v1427 = vand.u32 %v578, 4294901760
      %v1428 = vsub.f32 %v578, %v1427
      %1429 = vmatprep.subr.mxu0 %v1428
      %v1430 = vand.u32 %v577, 4294901760
      %v1431 = vsub.f32 %v577, %v1430
      %1432 = vmatpush1.msra.mxu0 %v1431
      %v1433 = vand.u32 %v580, 4294901760
      %v1434 = vsub.f32 %v580, %v1433
      %1435 = vmatprep.subr.mxu0 %v1434
      %v1436 = vand.u32 %v579, 4294901760
      %v1437 = vsub.f32 %v579, %v1436
      %1438 = vmatpush1.msra.mxu0 %v1437
      %v1439 = vand.u32 %v582, 4294901760
      %v1440 = vsub.f32 %v582, %v1439
      %1441 = vmatprep.subr.mxu0 %v1440
      %v1442 = vand.u32 %v581, 4294901760
      %v1443 = vsub.f32 %v581, %v1442
      %1444 = vmatpush1.msra.mxu0 %v1443
      %v1445 = vand.u32 %v584, 4294901760
      %v1446 = vsub.f32 %v584, %v1445
      %1447 = vmatprep.subr.mxu0 %v1446
      %v1448 = vand.u32 %v583, 4294901760
      %v1449 = vsub.f32 %v583, %v1448
      %1450 = vmatpush1.msra.mxu0 %v1449
      %v1451 = vand.u32 %v586, 4294901760
      %v1452 = vsub.f32 %v586, %v1451
      %1453 = vmatprep.subr.mxu0 %v1452
      %v1454 = vand.u32 %v585, 4294901760
      %v1455 = vsub.f32 %v585, %v1454
      %1456 = vmatpush1.msra.mxu0 %v1455
      %v1457 = vand.u32 %v588, 4294901760
      %v1458 = vsub.f32 %v588, %v1457
      %1459 = vmatprep.subr.mxu0 %v1458
      %v1460 = vand.u32 %v587, 4294901760
      %v1461 = vsub.f32 %v587, %v1460
      %1462 = vmatpush1.msra.mxu0 %v1461
      %v1463 = vand.u32 %v590, 4294901760
      %v1464 = vsub.f32 %v590, %v1463
      %1465 = vmatprep.subr.mxu0 %v1464
      %v1466 = vand.u32 %v589, 4294901760
      %v1467 = vsub.f32 %v589, %v1466
      %1468 = vmatpush1.msra.mxu0 %v1467
      %v1469 = vand.u32 %v592, 4294901760
      %v1470 = vsub.f32 %v592, %v1469
      %1471 = vmatprep.subr.mxu0 %v1470
      %v1472 = vand.u32 %v591, 4294901760
      %v1473 = vsub.f32 %v591, %v1472
      %1474 = vmatpush1.msra.mxu0 %v1473
      %v1475 = vand.u32 %v594, 4294901760
      %v1476 = vsub.f32 %v594, %v1475
      %1477 = vmatprep.subr.mxu0 %v1476
      %v1478 = vand.u32 %v593, 4294901760
      %v1479 = vsub.f32 %v593, %v1478
      %1480 = vmatpush1.msra.mxu0 %v1479
      %v1481 = vand.u32 %v596, 4294901760
      %v1482 = vsub.f32 %v596, %v1481
      %1483 = vmatprep.subr.mxu0 %v1482
      %v1484 = vand.u32 %v595, 4294901760
      %v1485 = vsub.f32 %v595, %v1484
      %1486 = vmatpush1.msra.mxu0 %v1485
      %v1487 = vand.u32 %v598, 4294901760
      %v1488 = vsub.f32 %v598, %v1487
      %1489 = vmatprep.subr.mxu0 %v1488
      %v1490 = vand.u32 %v597, 4294901760
      %v1491 = vsub.f32 %v597, %v1490
      %1492 = vmatpush1.msra.mxu0 %v1491
      %v1493 = vand.u32 %v600, 4294901760
      %v1494 = vsub.f32 %v600, %v1493
      %1495 = vmatprep.subr.mxu0 %v1494
      %v1496 = vand.u32 %v599, 4294901760
      %v1497 = vsub.f32 %v599, %v1496
      %1498 = vmatpush1.msra.mxu0 %v1497
      %v1499 = vand.u32 %v486, 4294901760
      %v1500 = vsub.f32 %v486, %v1499
      %1501 = vmatprep.mubr.f32.mxu0 %v1500
      %v1502 = vand.u32 %v483, 4294901760
      %v1503 = vsub.f32 %v483, %v1502
      %1504 = vmatmul.mubr.f32.gmra.mrb[0].mxu0 %v1503
      %v1505 = vpop.f32.mrb[0].mxu0
      %v1506 = vadd.f32 %v1247, %v1505
      %v1507 = vpop.f32.mrb[0].mxu0
      %v1508 = vadd.f32 %v1249, %v1507
      %v1509 = vand.u32 %v490, 4294901760
      %v1510 = vsub.f32 %v490, %v1509
      %1511 = vmatprep.mubr.f32.mxu0 %v1510
      %v1512 = vand.u32 %v488, 4294901760
      %v1513 = vsub.f32 %v488, %v1512
      %1514 = vmatmul.mubr.f32.gmra.mrb[0].mxu0 %v1513
      %v1515 = vpop.f32.mrb[0].mxu0
      %v1516 = vadd.f32 %v1255, %v1515
      %v1517 = vpop.f32.mrb[0].mxu0
      %v1518 = vadd.f32 %v1257, %v1517
      %v1519 = vand.u32 %v496, 4294901760
      %v1520 = vsub.f32 %v496, %v1519
      %1521 = vmatprep.mubr.f32.mxu0 %v1520
      %v1522 = vand.u32 %v493, 4294901760
      %v1523 = vsub.f32 %v493, %v1522
      %1524 = vmatmul.mubr.f32.gmra.mrb[0].mxu0 %v1523
      %v1525 = vpop.f32.mrb[0].mxu0
      %v1526 = vadd.f32 %v1263, %v1525
      %v1527 = vpop.f32.mrb[0].mxu0
      %v1528 = vadd.f32 %v1265, %v1527
      %v1529 = vand.u32 %v500, 4294901760
      %v1530 = vsub.f32 %v500, %v1529
      %1531 = vmatprep.mubr.f32.mxu0 %v1530
      %v1532 = vand.u32 %v498, 4294901760
      %v1533 = vsub.f32 %v498, %v1532
      %1534 = vmatmul.mubr.f32.gmra.mrb[0].mxu0 %v1533
      %v1535 = vpop.f32.mrb[0].mxu0
      %v1536 = vadd.f32 %v1271, %v1535
      %v1537 = vpop.f32.mrb[0].mxu0
      %v1538 = vadd.f32 %v1273, %v1537
      %v1539 = vand.u32 %v506, 4294901760
      %v1540 = vsub.f32 %v506, %v1539
      %1541 = vmatprep.mubr.f32.mxu0 %v1540
      %v1542 = vand.u32 %v503, 4294901760
      %v1543 = vsub.f32 %v503, %v1542
      %1544 = vmatmul.mubr.f32.gmra.mrb[0].mxu0 %v1543
      %v1545 = vpop.f32.mrb[0].mxu0
      %v1546 = vadd.f32 %v1279, %v1545
      %v1547 = vpop.f32.mrb[0].mxu0
      %v1548 = vadd.f32 %v1281, %v1547
      %v1549 = vand.u32 %v510, 4294901760
      %v1550 = vsub.f32 %v510, %v1549
      %1551 = vmatprep.mubr.f32.mxu0 %v1550
      %v1552 = vand.u32 %v508, 4294901760
      %v1553 = vsub.f32 %v508, %v1552
      %1554 = vmatmul.mubr.f32.gmra.mrb[0].mxu0 %v1553
      %v1555 = vpop.f32.mrb[0].mxu0
      %v1556 = vadd.f32 %v1287, %v1555
      %v1557 = vpop.f32.mrb[0].mxu0
      %v1558 = vadd.f32 %v1289, %v1557
      %v1559 = vand.u32 %v516, 4294901760
      %v1560 = vsub.f32 %v516, %v1559
      %1561 = vmatprep.mubr.f32.mxu0 %v1560
      %v1562 = vand.u32 %v513, 4294901760
      %v1563 = vsub.f32 %v513, %v1562
      %1564 = vmatmul.mubr.f32.gmra.mrb[0].mxu0 %v1563
      %v1565 = vpop.f32.mrb[0].mxu0
      %v1566 = vadd.f32 %v1295, %v1565
      %v1567 = vpop.f32.mrb[0].mxu0
      %v1568 = vadd.f32 %v1297, %v1567
      %v1569 = vand.u32 %v520, 4294901760
      %v1570 = vsub.f32 %v520, %v1569
      %1571 = vmatprep.mubr.f32.mxu0 %v1570
      %v1572 = vand.u32 %v518, 4294901760
      %v1573 = vsub.f32 %v518, %v1572
      %1574 = vmatmul.mubr.f32.gmra.mrb[0].mxu0 %v1573
      %v1575 = vpop.f32.mrb[0].mxu0
      %v1576 = vadd.f32 %v1303, %v1575
      %v1577 = vpop.f32.mrb[0].mxu0
      %v1578 = vadd.f32 %v1305, %v1577
      %1579 = vdwg.mxu0
      %v1580 = vand.u32 %v538, 4294901760
      %1581 = vmatprep.subr.mxu0 %v1580
      %v1582 = vand.u32 %v537, 4294901760
      %1583 = vmatpush1.msra.mxu0 %v1582
      %v1584 = vand.u32 %v540, 4294901760
      %1585 = vmatprep.subr.mxu0 %v1584
      %v1586 = vand.u32 %v539, 4294901760
      %1587 = vmatpush1.msra.mxu0 %v1586
      %v1588 = vand.u32 %v542, 4294901760
      %1589 = vmatprep.subr.mxu0 %v1588
      %v1590 = vand.u32 %v541, 4294901760
      %1591 = vmatpush1.msra.mxu0 %v1590
      %v1592 = vand.u32 %v544, 4294901760
      %1593 = vmatprep.subr.mxu0 %v1592
      %v1594 = vand.u32 %v543, 4294901760
      %1595 = vmatpush1.msra.mxu0 %v1594
      %v1596 = vand.u32 %v546, 4294901760
      %1597 = vmatprep.subr.mxu0 %v1596
      %v1598 = vand.u32 %v545, 4294901760
      %1599 = vmatpush1.msra.mxu0 %v1598
      %v1600 = vand.u32 %v548, 4294901760
      %1601 = vmatprep.subr.mxu0 %v1600
      %v1602 = vand.u32 %v547, 4294901760
      %1603 = vmatpush1.msra.mxu0 %v1602
      %v1604 = vand.u32 %v550, 4294901760
      %1605 = vmatprep.subr.mxu0 %v1604
      %v1606 = vand.u32 %v549, 4294901760
      %1607 = vmatpush1.msra.mxu0 %v1606
      %v1608 = vand.u32 %v552, 4294901760
      %1609 = vmatprep.subr.mxu0 %v1608
      %v1610 = vand.u32 %v551, 4294901760
      %1611 = vmatpush1.msra.mxu0 %v1610
      %v1612 = vand.u32 %v554, 4294901760
      %1613 = vmatprep.subr.mxu0 %v1612
      %v1614 = vand.u32 %v553, 4294901760
      %1615 = vmatpush1.msra.mxu0 %v1614
      %v1616 = vand.u32 %v556, 4294901760
      %1617 = vmatprep.subr.mxu0 %v1616
      %v1618 = vand.u32 %v555, 4294901760
      %1619 = vmatpush1.msra.mxu0 %v1618
      %v1620 = vand.u32 %v558, 4294901760
      %1621 = vmatprep.subr.mxu0 %v1620
      %v1622 = vand.u32 %v557, 4294901760
      %1623 = vmatpush1.msra.mxu0 %v1622
      %v1624 = vand.u32 %v560, 4294901760
      %1625 = vmatprep.subr.mxu0 %v1624
      %v1626 = vand.u32 %v559, 4294901760
      %1627 = vmatpush1.msra.mxu0 %v1626
      %v1628 = vand.u32 %v562, 4294901760
      %1629 = vmatprep.subr.mxu0 %v1628
      %v1630 = vand.u32 %v561, 4294901760
      %1631 = vmatpush1.msra.mxu0 %v1630
      %v1632 = vand.u32 %v564, 4294901760
      %1633 = vmatprep.subr.mxu0 %v1632
      %v1634 = vand.u32 %v563, 4294901760
      %1635 = vmatpush1.msra.mxu0 %v1634
      %v1636 = vand.u32 %v566, 4294901760
      %1637 = vmatprep.subr.mxu0 %v1636
      %v1638 = vand.u32 %v565, 4294901760
      %1639 = vmatpush1.msra.mxu0 %v1638
      %v1640 = vand.u32 %v568, 4294901760
      %1641 = vmatprep.subr.mxu0 %v1640
      %v1642 = vand.u32 %v567, 4294901760
      %1643 = vmatpush1.msra.mxu0 %v1642
      %v1644 = vand.u32 %v570, 4294901760
      %1645 = vmatprep.subr.mxu0 %v1644
      %v1646 = vand.u32 %v569, 4294901760
      %1647 = vmatpush1.msra.mxu0 %v1646
      %v1648 = vand.u32 %v572, 4294901760
      %1649 = vmatprep.subr.mxu0 %v1648
      %v1650 = vand.u32 %v571, 4294901760
      %1651 = vmatpush1.msra.mxu0 %v1650
      %v1652 = vand.u32 %v574, 4294901760
      %1653 = vmatprep.subr.mxu0 %v1652
      %v1654 = vand.u32 %v573, 4294901760
      %1655 = vmatpush1.msra.mxu0 %v1654
      %v1656 = vand.u32 %v576, 4294901760
      %1657 = vmatprep.subr.mxu0 %v1656
      %v1658 = vand.u32 %v575, 4294901760
      %1659 = vmatpush1.msra.mxu0 %v1658
      %v1660 = vand.u32 %v578, 4294901760
      %1661 = vmatprep.subr.mxu0 %v1660
      %v1662 = vand.u32 %v577, 4294901760
      %1663 = vmatpush1.msra.mxu0 %v1662
      %v1664 = vand.u32 %v580, 4294901760
      %1665 = vmatprep.subr.mxu0 %v1664
      %v1666 = vand.u32 %v579, 4294901760
      %1667 = vmatpush1.msra.mxu0 %v1666
      %v1668 = vand.u32 %v582, 4294901760
      %1669 = vmatprep.subr.mxu0 %v1668
      %v1670 = vand.u32 %v581, 4294901760
      %1671 = vmatpush1.msra.mxu0 %v1670
      %v1672 = vand.u32 %v584, 4294901760
      %1673 = vmatprep.subr.mxu0 %v1672
      %v1674 = vand.u32 %v583, 4294901760
      %1675 = vmatpush1.msra.mxu0 %v1674
      %v1676 = vand.u32 %v586, 4294901760
      %1677 = vmatprep.subr.mxu0 %v1676
      %v1678 = vand.u32 %v585, 4294901760
      %1679 = vmatpush1.msra.mxu0 %v1678
      %v1680 = vand.u32 %v588, 4294901760
      %1681 = vmatprep.subr.mxu0 %v1680
      %v1682 = vand.u32 %v587, 4294901760
      %1683 = vmatpush1.msra.mxu0 %v1682
      %v1684 = vand.u32 %v590, 4294901760
      %1685 = vmatprep.subr.mxu0 %v1684
      %v1686 = vand.u32 %v589, 4294901760
      %1687 = vmatpush1.msra.mxu0 %v1686
      %v1688 = vand.u32 %v592, 4294901760
      %1689 = vmatprep.subr.mxu0 %v1688
      %v1690 = vand.u32 %v591, 4294901760
      %1691 = vmatpush1.msra.mxu0 %v1690
      %v1692 = vand.u32 %v594, 4294901760
      %1693 = vmatprep.subr.mxu0 %v1692
      %v1694 = vand.u32 %v593, 4294901760
      %1695 = vmatpush1.msra.mxu0 %v1694
      %v1696 = vand.u32 %v596, 4294901760
      %1697 = vmatprep.subr.mxu0 %v1696
      %v1698 = vand.u32 %v595, 4294901760
      %1699 = vmatpush1.msra.mxu0 %v1698
      %v1700 = vand.u32 %v598, 4294901760
      %1701 = vmatprep.subr.mxu0 %v1700
      %v1702 = vand.u32 %v597, 4294901760
      %1703 = vmatpush1.msra.mxu0 %v1702
      %v1704 = vand.u32 %v600, 4294901760
      %1705 = vmatprep.subr.mxu0 %v1704
      %v1706 = vand.u32 %v599, 4294901760
      %1707 = vmatpush1.msra.mxu0 %v1706
      %v1708 = vand.u32 %v486, 4294901760
      %v1709 = vsub.f32 %v486, %v1708
      %v1710 = vand.u32 %v1709, 4294901760
      %1711 = vmatprep.mubr.f32.mxu0 %v1710
      %v1712 = vand.u32 %v483, 4294901760
      %v1713 = vsub.f32 %v483, %v1712
      %v1714 = vand.u32 %v1713, 4294901760
      %1715 = vmatmul.mubr.f32.gmra.mrb[0].mxu0 %v1714
      %v1716 = vpop.f32.mrb[0].mxu0
      %v1717 = vadd.f32 %v1506, %v1716
      %v1718 = vpop.f32.mrb[0].mxu0
      %v1719 = vadd.f32 %v1508, %v1718
      %v1720 = vand.u32 %v490, 4294901760
      %v1721 = vsub.f32 %v490, %v1720
      %v1722 = vand.u32 %v1721, 4294901760
      %1723 = vmatprep.mubr.f32.mxu0 %v1722
      %v1724 = vand.u32 %v488, 4294901760
      %v1725 = vsub.f32 %v488, %v1724
      %v1726 = vand.u32 %v1725, 4294901760
      %1727 = vmatmul.mubr.f32.gmra.mrb[0].mxu0 %v1726
      %v1728 = vpop.f32.mrb[0].mxu0
      %v1729 = vadd.f32 %v1516, %v1728
      %v1730 = vpop.f32.mrb[0].mxu0
      %v1731 = vadd.f32 %v1518, %v1730
      %v1732 = vand.u32 %v496, 4294901760
      %v1733 = vsub.f32 %v496, %v1732
      %v1734 = vand.u32 %v1733, 4294901760
      %1735 = vmatprep.mubr.f32.mxu0 %v1734
      %v1736 = vand.u32 %v493, 4294901760
      %v1737 = vsub.f32 %v493, %v1736
      %v1738 = vand.u32 %v1737, 4294901760
      %1739 = vmatmul.mubr.f32.gmra.mrb[0].mxu0 %v1738
      %v1740 = vpop.f32.mrb[0].mxu0
      %v1741 = vadd.f32 %v1526, %v1740
      %v1742 = vpop.f32.mrb[0].mxu0
      %v1743 = vadd.f32 %v1528, %v1742
      %v1744 = vand.u32 %v500, 4294901760
      %v1745 = vsub.f32 %v500, %v1744
      %v1746 = vand.u32 %v1745, 4294901760
      %1747 = vmatprep.mubr.f32.mxu0 %v1746
      %v1748 = vand.u32 %v498, 4294901760
      %v1749 = vsub.f32 %v498, %v1748
      %v1750 = vand.u32 %v1749, 4294901760
      %1751 = vmatmul.mubr.f32.gmra.mrb[0].mxu0 %v1750
      %v1752 = vpop.f32.mrb[0].mxu0
      %v1753 = vadd.f32 %v1536, %v1752
      %v1754 = vpop.f32.mrb[0].mxu0
      %v1755 = vadd.f32 %v1538, %v1754
      %v1756 = vand.u32 %v506, 4294901760
      %v1757 = vsub.f32 %v506, %v1756
      %v1758 = vand.u32 %v1757, 4294901760
      %1759 = vmatprep.mubr.f32.mxu0 %v1758
      %v1760 = vand.u32 %v503, 4294901760
      %v1761 = vsub.f32 %v503, %v1760
      %v1762 = vand.u32 %v1761, 4294901760
      %1763 = vmatmul.mubr.f32.gmra.mrb[0].mxu0 %v1762
      %v1764 = vpop.f32.mrb[0].mxu0
      %v1765 = vadd.f32 %v1546, %v1764
      %v1766 = vpop.f32.mrb[0].mxu0
      %v1767 = vadd.f32 %v1548, %v1766
      %v1768 = vand.u32 %v510, 4294901760
      %v1769 = vsub.f32 %v510, %v1768
      %v1770 = vand.u32 %v1769, 4294901760
      %1771 = vmatprep.mubr.f32.mxu0 %v1770
      %v1772 = vand.u32 %v508, 4294901760
      %v1773 = vsub.f32 %v508, %v1772
      %v1774 = vand.u32 %v1773, 4294901760
      %1775 = vmatmul.mubr.f32.gmra.mrb[0].mxu0 %v1774
      %v1776 = vpop.f32.mrb[0].mxu0
      %v1777 = vadd.f32 %v1556, %v1776
      %v1778 = vpop.f32.mrb[0].mxu0
      %v1779 = vadd.f32 %v1558, %v1778
      %v1780 = vand.u32 %v516, 4294901760
      %v1781 = vsub.f32 %v516, %v1780
      %v1782 = vand.u32 %v1781, 4294901760
      %1783 = vmatprep.mubr.f32.mxu0 %v1782
      %v1784 = vand.u32 %v513, 4294901760
      %v1785 = vsub.f32 %v513, %v1784
      %v1786 = vand.u32 %v1785, 4294901760
      %1787 = vmatmul.mubr.f32.gmra.mrb[0].mxu0 %v1786
      %v1788 = vpop.f32.mrb[0].mxu0
      %v1789 = vadd.f32 %v1566, %v1788
      %v1790 = vpop.f32.mrb[0].mxu0
      %v1791 = vadd.f32 %v1568, %v1790
      %v1792 = vand.u32 %v520, 4294901760
      %v1793 = vsub.f32 %v520, %v1792
      %v1794 = vand.u32 %v1793, 4294901760
      %1795 = vmatprep.mubr.f32.mxu0 %v1794
      %v1796 = vand.u32 %v518, 4294901760
      %v1797 = vsub.f32 %v518, %v1796
      %v1798 = vand.u32 %v1797, 4294901760
      %1799 = vmatmul.mubr.f32.gmra.mrb[0].mxu0 %v1798
      %v1800 = vpop.f32.mrb[0].mxu0
      %v1801 = vadd.f32 %v1576, %v1800
      %v1802 = vpop.f32.mrb[0].mxu0
      %v1803 = vadd.f32 %v1578, %v1802
      %1804 = vdwg.mxu0
      %v1805 = vand.u32 %v538, 4294901760
      %v1806 = vsub.f32 %v538, %v1805
      %v1807 = vand.u32 %v1806, 4294901760
      %1808 = vmatprep.subr.mxu0 %v1807
      %v1809 = vand.u32 %v537, 4294901760
      %v1810 = vsub.f32 %v537, %v1809
      %v1811 = vand.u32 %v1810, 4294901760
      %1812 = vmatpush1.msra.mxu0 %v1811
      %v1813 = vand.u32 %v540, 4294901760
      %v1814 = vsub.f32 %v540, %v1813
      %v1815 = vand.u32 %v1814, 4294901760
      %1816 = vmatprep.subr.mxu0 %v1815
      %v1817 = vand.u32 %v539, 4294901760
      %v1818 = vsub.f32 %v539, %v1817
      %v1819 = vand.u32 %v1818, 4294901760
      %1820 = vmatpush1.msra.mxu0 %v1819
      %v1821 = vand.u32 %v542, 4294901760
      %v1822 = vsub.f32 %v542, %v1821
      %v1823 = vand.u32 %v1822, 4294901760
      %1824 = vmatprep.subr.mxu0 %v1823
      %v1825 = vand.u32 %v541, 4294901760
      %v1826 = vsub.f32 %v541, %v1825
      %v1827 = vand.u32 %v1826, 4294901760
      %1828 = vmatpush1.msra.mxu0 %v1827
      %v1829 = vand.u32 %v544, 4294901760
      %v1830 = vsub.f32 %v544, %v1829
      %v1831 = vand.u32 %v1830, 4294901760
      %1832 = vmatprep.subr.mxu0 %v1831
      %v1833 = vand.u32 %v543, 4294901760
      %v1834 = vsub.f32 %v543, %v1833
      %v1835 = vand.u32 %v1834, 4294901760
      %1836 = vmatpush1.msra.mxu0 %v1835
      %v1837 = vand.u32 %v546, 4294901760
      %v1838 = vsub.f32 %v546, %v1837
      %v1839 = vand.u32 %v1838, 4294901760
      %1840 = vmatprep.subr.mxu0 %v1839
      %v1841 = vand.u32 %v545, 4294901760
      %v1842 = vsub.f32 %v545, %v1841
      %v1843 = vand.u32 %v1842, 4294901760
      %1844 = vmatpush1.msra.mxu0 %v1843
      %v1845 = vand.u32 %v548, 4294901760
      %v1846 = vsub.f32 %v548, %v1845
      %v1847 = vand.u32 %v1846, 4294901760
      %1848 = vmatprep.subr.mxu0 %v1847
      %v1849 = vand.u32 %v547, 4294901760
      %v1850 = vsub.f32 %v547, %v1849
      %v1851 = vand.u32 %v1850, 4294901760
      %1852 = vmatpush1.msra.mxu0 %v1851
      %v1853 = vand.u32 %v550, 4294901760
      %v1854 = vsub.f32 %v550, %v1853
      %v1855 = vand.u32 %v1854, 4294901760
      %1856 = vmatprep.subr.mxu0 %v1855
      %v1857 = vand.u32 %v549, 4294901760
      %v1858 = vsub.f32 %v549, %v1857
      %v1859 = vand.u32 %v1858, 4294901760
      %1860 = vmatpush1.msra.mxu0 %v1859
      %v1861 = vand.u32 %v552, 4294901760
      %v1862 = vsub.f32 %v552, %v1861
      %v1863 = vand.u32 %v1862, 4294901760
      %1864 = vmatprep.subr.mxu0 %v1863
      %v1865 = vand.u32 %v551, 4294901760
      %v1866 = vsub.f32 %v551, %v1865
      %v1867 = vand.u32 %v1866, 4294901760
      %1868 = vmatpush1.msra.mxu0 %v1867
      %v1869 = vand.u32 %v554, 4294901760
      %v1870 = vsub.f32 %v554, %v1869
      %v1871 = vand.u32 %v1870, 4294901760
      %1872 = vmatprep.subr.mxu0 %v1871
      %v1873 = vand.u32 %v553, 4294901760
      %v1874 = vsub.f32 %v553, %v1873
      %v1875 = vand.u32 %v1874, 4294901760
      %1876 = vmatpush1.msra.mxu0 %v1875
      %v1877 = vand.u32 %v556, 4294901760
      %v1878 = vsub.f32 %v556, %v1877
      %v1879 = vand.u32 %v1878, 4294901760
      %1880 = vmatprep.subr.mxu0 %v1879
      %v1881 = vand.u32 %v555, 4294901760
      %v1882 = vsub.f32 %v555, %v1881
      %v1883 = vand.u32 %v1882, 4294901760
      %1884 = vmatpush1.msra.mxu0 %v1883
      %v1885 = vand.u32 %v558, 4294901760
      %v1886 = vsub.f32 %v558, %v1885
      %v1887 = vand.u32 %v1886, 4294901760
      %1888 = vmatprep.subr.mxu0 %v1887
      %v1889 = vand.u32 %v557, 4294901760
      %v1890 = vsub.f32 %v557, %v1889
      %v1891 = vand.u32 %v1890, 4294901760
      %1892 = vmatpush1.msra.mxu0 %v1891
      %v1893 = vand.u32 %v560, 4294901760
      %v1894 = vsub.f32 %v560, %v1893
      %v1895 = vand.u32 %v1894, 4294901760
      %1896 = vmatprep.subr.mxu0 %v1895
      %v1897 = vand.u32 %v559, 4294901760
      %v1898 = vsub.f32 %v559, %v1897
      %v1899 = vand.u32 %v1898, 4294901760
      %1900 = vmatpush1.msra.mxu0 %v1899
      %v1901 = vand.u32 %v562, 4294901760
      %v1902 = vsub.f32 %v562, %v1901
      %v1903 = vand.u32 %v1902, 4294901760
      %1904 = vmatprep.subr.mxu0 %v1903
      %v1905 = vand.u32 %v561, 4294901760
      %v1906 = vsub.f32 %v561, %v1905
      %v1907 = vand.u32 %v1906, 4294901760
      %1908 = vmatpush1.msra.mxu0 %v1907
      %v1909 = vand.u32 %v564, 4294901760
      %v1910 = vsub.f32 %v564, %v1909
      %v1911 = vand.u32 %v1910, 4294901760
      %1912 = vmatprep.subr.mxu0 %v1911
      %v1913 = vand.u32 %v563, 4294901760
      %v1914 = vsub.f32 %v563, %v1913
      %v1915 = vand.u32 %v1914, 4294901760
      %1916 = vmatpush1.msra.mxu0 %v1915
      %v1917 = vand.u32 %v566, 4294901760
      %v1918 = vsub.f32 %v566, %v1917
      %v1919 = vand.u32 %v1918, 4294901760
      %1920 = vmatprep.subr.mxu0 %v1919
      %v1921 = vand.u32 %v565, 4294901760
      %v1922 = vsub.f32 %v565, %v1921
      %v1923 = vand.u32 %v1922, 4294901760
      %1924 = vmatpush1.msra.mxu0 %v1923
      %v1925 = vand.u32 %v568, 4294901760
      %v1926 = vsub.f32 %v568, %v1925
      %v1927 = vand.u32 %v1926, 4294901760
      %1928 = vmatprep.subr.mxu0 %v1927
      %v1929 = vand.u32 %v567, 4294901760
      %v1930 = vsub.f32 %v567, %v1929
      %v1931 = vand.u32 %v1930, 4294901760
      %1932 = vmatpush1.msra.mxu0 %v1931
      %v1933 = vand.u32 %v570, 4294901760
      %v1934 = vsub.f32 %v570, %v1933
      %v1935 = vand.u32 %v1934, 4294901760
      %1936 = vmatprep.subr.mxu0 %v1935
      %v1937 = vand.u32 %v569, 4294901760
      %v1938 = vsub.f32 %v569, %v1937
      %v1939 = vand.u32 %v1938, 4294901760
      %1940 = vmatpush1.msra.mxu0 %v1939
      %v1941 = vand.u32 %v572, 4294901760
      %v1942 = vsub.f32 %v572, %v1941
      %v1943 = vand.u32 %v1942, 4294901760
      %1944 = vmatprep.subr.mxu0 %v1943
      %v1945 = vand.u32 %v571, 4294901760
      %v1946 = vsub.f32 %v571, %v1945
      %v1947 = vand.u32 %v1946, 4294901760
      %1948 = vmatpush1.msra.mxu0 %v1947
      %v1949 = vand.u32 %v574, 4294901760
      %v1950 = vsub.f32 %v574, %v1949
      %v1951 = vand.u32 %v1950, 4294901760
      %1952 = vmatprep.subr.mxu0 %v1951
      %v1953 = vand.u32 %v573, 4294901760
      %v1954 = vsub.f32 %v573, %v1953
      %v1955 = vand.u32 %v1954, 4294901760
      %1956 = vmatpush1.msra.mxu0 %v1955
      %v1957 = vand.u32 %v576, 4294901760
      %v1958 = vsub.f32 %v576, %v1957
      %v1959 = vand.u32 %v1958, 4294901760
      %1960 = vmatprep.subr.mxu0 %v1959
      %v1961 = vand.u32 %v575, 4294901760
      %v1962 = vsub.f32 %v575, %v1961
      %v1963 = vand.u32 %v1962, 4294901760
      %1964 = vmatpush1.msra.mxu0 %v1963
      %v1965 = vand.u32 %v578, 4294901760
      %v1966 = vsub.f32 %v578, %v1965
      %v1967 = vand.u32 %v1966, 4294901760
      %1968 = vmatprep.subr.mxu0 %v1967
      %v1969 = vand.u32 %v577, 4294901760
      %v1970 = vsub.f32 %v577, %v1969
      %v1971 = vand.u32 %v1970, 4294901760
      %1972 = vmatpush1.msra.mxu0 %v1971
      %v1973 = vand.u32 %v580, 4294901760
      %v1974 = vsub.f32 %v580, %v1973
      %v1975 = vand.u32 %v1974, 4294901760
      %1976 = vmatprep.subr.mxu0 %v1975
      %v1977 = vand.u32 %v579, 4294901760
      %v1978 = vsub.f32 %v579, %v1977
      %v1979 = vand.u32 %v1978, 4294901760
      %1980 = vmatpush1.msra.mxu0 %v1979
      %v1981 = vand.u32 %v582, 4294901760
      %v1982 = vsub.f32 %v582, %v1981
      %v1983 = vand.u32 %v1982, 4294901760
      %1984 = vmatprep.subr.mxu0 %v1983
      %v1985 = vand.u32 %v581, 4294901760
      %v1986 = vsub.f32 %v581, %v1985
      %v1987 = vand.u32 %v1986, 4294901760
      %1988 = vmatpush1.msra.mxu0 %v1987
      %v1989 = vand.u32 %v584, 4294901760
      %v1990 = vsub.f32 %v584, %v1989
      %v1991 = vand.u32 %v1990, 4294901760
      %1992 = vmatprep.subr.mxu0 %v1991
      %v1993 = vand.u32 %v583, 4294901760
      %v1994 = vsub.f32 %v583, %v1993
      %v1995 = vand.u32 %v1994, 4294901760
      %1996 = vmatpush1.msra.mxu0 %v1995
      %v1997 = vand.u32 %v586, 4294901760
      %v1998 = vsub.f32 %v586, %v1997
      %v1999 = vand.u32 %v1998, 4294901760
      %2000 = vmatprep.subr.mxu0 %v1999
      %v2001 = vand.u32 %v585, 4294901760
      %v2002 = vsub.f32 %v585, %v2001
      %v2003 = vand.u32 %v2002, 4294901760
      %2004 = vmatpush1.msra.mxu0 %v2003
      %v2005 = vand.u32 %v588, 4294901760
      %v2006 = vsub.f32 %v588, %v2005
      %v2007 = vand.u32 %v2006, 4294901760
      %2008 = vmatprep.subr.mxu0 %v2007
      %v2009 = vand.u32 %v587, 4294901760
      %v2010 = vsub.f32 %v587, %v2009
      %v2011 = vand.u32 %v2010, 4294901760
      %2012 = vmatpush1.msra.mxu0 %v2011
      %v2013 = vand.u32 %v590, 4294901760
      %v2014 = vsub.f32 %v590, %v2013
      %v2015 = vand.u32 %v2014, 4294901760
      %2016 = vmatprep.subr.mxu0 %v2015
      %v2017 = vand.u32 %v589, 4294901760
      %v2018 = vsub.f32 %v589, %v2017
      %v2019 = vand.u32 %v2018, 4294901760
      %2020 = vmatpush1.msra.mxu0 %v2019
      %v2021 = vand.u32 %v592, 4294901760
      %v2022 = vsub.f32 %v592, %v2021
      %v2023 = vand.u32 %v2022, 4294901760
      %2024 = vmatprep.subr.mxu0 %v2023
      %v2025 = vand.u32 %v591, 4294901760
      %v2026 = vsub.f32 %v591, %v2025
      %v2027 = vand.u32 %v2026, 4294901760
      %2028 = vmatpush1.msra.mxu0 %v2027
      %v2029 = vand.u32 %v594, 4294901760
      %v2030 = vsub.f32 %v594, %v2029
      %v2031 = vand.u32 %v2030, 4294901760
      %2032 = vmatprep.subr.mxu0 %v2031
      %v2033 = vand.u32 %v593, 4294901760
      %v2034 = vsub.f32 %v593, %v2033
      %v2035 = vand.u32 %v2034, 4294901760
      %2036 = vmatpush1.msra.mxu0 %v2035
      %v2037 = vand.u32 %v596, 4294901760
      %v2038 = vsub.f32 %v596, %v2037
      %v2039 = vand.u32 %v2038, 4294901760
      %2040 = vmatprep.subr.mxu0 %v2039
      %v2041 = vand.u32 %v595, 4294901760
      %v2042 = vsub.f32 %v595, %v2041
      %v2043 = vand.u32 %v2042, 4294901760
      %2044 = vmatpush1.msra.mxu0 %v2043
      %v2045 = vand.u32 %v598, 4294901760
      %v2046 = vsub.f32 %v598, %v2045
      %v2047 = vand.u32 %v2046, 4294901760
      %2048 = vmatprep.subr.mxu0 %v2047
      %v2049 = vand.u32 %v597, 4294901760
      %v2050 = vsub.f32 %v597, %v2049
      %v2051 = vand.u32 %v2050, 4294901760
      %2052 = vmatpush1.msra.mxu0 %v2051
      %v2053 = vand.u32 %v600, 4294901760
      %v2054 = vsub.f32 %v600, %v2053
      %v2055 = vand.u32 %v2054, 4294901760
      %2056 = vmatprep.subr.mxu0 %v2055
      %v2057 = vand.u32 %v599, 4294901760
      %v2058 = vsub.f32 %v599, %v2057
      %v2059 = vand.u32 %v2058, 4294901760
      %2060 = vmatpush1.msra.mxu0 %v2059
      %v2061 = vand.u32 %v486, 4294901760
      %2062 = vmatprep.mubr.f32.mxu0 %v2061
      %v2063 = vand.u32 %v483, 4294901760
      %2064 = vmatmul.mubr.f32.gmra.mrb[0].mxu0 %v2063
      %v2065 = vpop.f32.mrb[0].mxu0
      %v2066 = vadd.f32 %v1717, %v2065
      %v2067 = vpop.f32.mrb[0].mxu0
      %v2068 = vadd.f32 %v1719, %v2067
      %v2069 = vand.u32 %v490, 4294901760
      %2070 = vmatprep.mubr.f32.mxu0 %v2069
      %v2071 = vand.u32 %v488, 4294901760
      %2072 = vmatmul.mubr.f32.gmra.mrb[0].mxu0 %v2071
      %v2073 = vpop.f32.mrb[0].mxu0
      %v2074 = vadd.f32 %v1729, %v2073
      %v2075 = vpop.f32.mrb[0].mxu0
      %v2076 = vadd.f32 %v1731, %v2075
      %v2077 = vand.u32 %v496, 4294901760
      %2078 = vmatprep.mubr.f32.mxu0 %v2077
      %v2079 = vand.u32 %v493, 4294901760
      %2080 = vmatmul.mubr.f32.gmra.mrb[0].mxu0 %v2079
      %v2081 = vpop.f32.mrb[0].mxu0
      %v2082 = vadd.f32 %v1741, %v2081
      %v2083 = vpop.f32.mrb[0].mxu0
      %v2084 = vadd.f32 %v1743, %v2083
      %v2085 = vand.u32 %v500, 4294901760
      %2086 = vmatprep.mubr.f32.mxu0 %v2085
      %v2087 = vand.u32 %v498, 4294901760
      %2088 = vmatmul.mubr.f32.gmra.mrb[0].mxu0 %v2087
      %v2089 = vpop.f32.mrb[0].mxu0
      %v2090 = vadd.f32 %v1753, %v2089
      %v2091 = vpop.f32.mrb[0].mxu0
      %v2092 = vadd.f32 %v1755, %v2091
      %v2093 = vand.u32 %v506, 4294901760
      %2094 = vmatprep.mubr.f32.mxu0 %v2093
      %v2095 = vand.u32 %v503, 4294901760
      %2096 = vmatmul.mubr.f32.gmra.mrb[0].mxu0 %v2095
      %v2097 = vpop.f32.mrb[0].mxu0
      %v2098 = vadd.f32 %v1765, %v2097
      %v2099 = vpop.f32.mrb[0].mxu0
      %v2100 = vadd.f32 %v1767, %v2099
      %v2101 = vand.u32 %v510, 4294901760
      %2102 = vmatprep.mubr.f32.mxu0 %v2101
      %v2103 = vand.u32 %v508, 4294901760
      %2104 = vmatmul.mubr.f32.gmra.mrb[0].mxu0 %v2103
      %v2105 = vpop.f32.mrb[0].mxu0
      %v2106 = vadd.f32 %v1777, %v2105
      %v2107 = vpop.f32.mrb[0].mxu0
      %v2108 = vadd.f32 %v1779, %v2107
      %v2109 = vand.u32 %v516, 4294901760
      %2110 = vmatprep.mubr.f32.mxu0 %v2109
      %v2111 = vand.u32 %v513, 4294901760
      %2112 = vmatmul.mubr.f32.gmra.mrb[0].mxu0 %v2111
      %v2113 = vpop.f32.mrb[0].mxu0
      %v2114 = vadd.f32 %v1789, %v2113
      %v2115 = vpop.f32.mrb[0].mxu0
      %v2116 = vadd.f32 %v1791, %v2115
      %v2117 = vand.u32 %v520, 4294901760
      %2118 = vmatprep.mubr.f32.mxu0 %v2117
      %v2119 = vand.u32 %v518, 4294901760
      %2120 = vmatmul.mubr.f32.gmra.mrb[0].mxu0 %v2119
      %v2121 = vpop.f32.mrb[0].mxu0
      %v2122 = vadd.f32 %v1801, %v2121
      %v2123 = vpop.f32.mrb[0].mxu0
      %v2124 = vadd.f32 %v1803, %v2123
      %2125 = vdwg.mxu0
      %v2126 = vand.u32 %v538, 4294901760
      %2127 = vmatprep.subr.mxu0 %v2126
      %v2128 = vand.u32 %v537, 4294901760
      %2129 = vmatpush1.msra.mxu0 %v2128
      %v2130 = vand.u32 %v540, 4294901760
      %2131 = vmatprep.subr.mxu0 %v2130
      %v2132 = vand.u32 %v539, 4294901760
      %2133 = vmatpush1.msra.mxu0 %v2132
      %v2134 = vand.u32 %v542, 4294901760
      %2135 = vmatprep.subr.mxu0 %v2134
      %v2136 = vand.u32 %v541, 4294901760
      %2137 = vmatpush1.msra.mxu0 %v2136
      %v2138 = vand.u32 %v544, 4294901760
      %2139 = vmatprep.subr.mxu0 %v2138
      %v2140 = vand.u32 %v543, 4294901760
      %2141 = vmatpush1.msra.mxu0 %v2140
      %v2142 = vand.u32 %v546, 4294901760
      %2143 = vmatprep.subr.mxu0 %v2142
      %v2144 = vand.u32 %v545, 4294901760
      %2145 = vmatpush1.msra.mxu0 %v2144
      %v2146 = vand.u32 %v548, 4294901760
      %2147 = vmatprep.subr.mxu0 %v2146
      %v2148 = vand.u32 %v547, 4294901760
      %2149 = vmatpush1.msra.mxu0 %v2148
      %v2150 = vand.u32 %v550, 4294901760
      %2151 = vmatprep.subr.mxu0 %v2150
      %v2152 = vand.u32 %v549, 4294901760
      %2153 = vmatpush1.msra.mxu0 %v2152
      %v2154 = vand.u32 %v552, 4294901760
      %2155 = vmatprep.subr.mxu0 %v2154
      %v2156 = vand.u32 %v551, 4294901760
      %2157 = vmatpush1.msra.mxu0 %v2156
      %v2158 = vand.u32 %v554, 4294901760
      %2159 = vmatprep.subr.mxu0 %v2158
      %v2160 = vand.u32 %v553, 4294901760
      %2161 = vmatpush1.msra.mxu0 %v2160
      %v2162 = vand.u32 %v556, 4294901760
      %2163 = vmatprep.subr.mxu0 %v2162
      %v2164 = vand.u32 %v555, 4294901760
      %2165 = vmatpush1.msra.mxu0 %v2164
      %v2166 = vand.u32 %v558, 4294901760
      %2167 = vmatprep.subr.mxu0 %v2166
      %v2168 = vand.u32 %v557, 4294901760
      %2169 = vmatpush1.msra.mxu0 %v2168
      %v2170 = vand.u32 %v560, 4294901760
      %2171 = vmatprep.subr.mxu0 %v2170
      %v2172 = vand.u32 %v559, 4294901760
      %2173 = vmatpush1.msra.mxu0 %v2172
      %v2174 = vand.u32 %v562, 4294901760
      %2175 = vmatprep.subr.mxu0 %v2174
      %v2176 = vand.u32 %v561, 4294901760
      %2177 = vmatpush1.msra.mxu0 %v2176
      %v2178 = vand.u32 %v564, 4294901760
      %2179 = vmatprep.subr.mxu0 %v2178
      %v2180 = vand.u32 %v563, 4294901760
      %2181 = vmatpush1.msra.mxu0 %v2180
      %v2182 = vand.u32 %v566, 4294901760
      %2183 = vmatprep.subr.mxu0 %v2182
      %v2184 = vand.u32 %v565, 4294901760
      %2185 = vmatpush1.msra.mxu0 %v2184
      %v2186 = vand.u32 %v568, 4294901760
      %2187 = vmatprep.subr.mxu0 %v2186
      %v2188 = vand.u32 %v567, 4294901760
      %2189 = vmatpush1.msra.mxu0 %v2188
      %v2190 = vand.u32 %v570, 4294901760
      %2191 = vmatprep.subr.mxu0 %v2190
      %v2192 = vand.u32 %v569, 4294901760
      %2193 = vmatpush1.msra.mxu0 %v2192
      %v2194 = vand.u32 %v572, 4294901760
      %2195 = vmatprep.subr.mxu0 %v2194
      %v2196 = vand.u32 %v571, 4294901760
      %2197 = vmatpush1.msra.mxu0 %v2196
      %v2198 = vand.u32 %v574, 4294901760
      %2199 = vmatprep.subr.mxu0 %v2198
      %v2200 = vand.u32 %v573, 4294901760
      %2201 = vmatpush1.msra.mxu0 %v2200
      %v2202 = vand.u32 %v576, 4294901760
      %2203 = vmatprep.subr.mxu0 %v2202
      %v2204 = vand.u32 %v575, 4294901760
      %2205 = vmatpush1.msra.mxu0 %v2204
      %v2206 = vand.u32 %v578, 4294901760
      %2207 = vmatprep.subr.mxu0 %v2206
      %v2208 = vand.u32 %v577, 4294901760
      %2209 = vmatpush1.msra.mxu0 %v2208
      %v2210 = vand.u32 %v580, 4294901760
      %2211 = vmatprep.subr.mxu0 %v2210
      %v2212 = vand.u32 %v579, 4294901760
      %2213 = vmatpush1.msra.mxu0 %v2212
      %v2214 = vand.u32 %v582, 4294901760
      %2215 = vmatprep.subr.mxu0 %v2214
      %v2216 = vand.u32 %v581, 4294901760
      %2217 = vmatpush1.msra.mxu0 %v2216
      %v2218 = vand.u32 %v584, 4294901760
      %2219 = vmatprep.subr.mxu0 %v2218
      %v2220 = vand.u32 %v583, 4294901760
      %2221 = vmatpush1.msra.mxu0 %v2220
      %v2222 = vand.u32 %v586, 4294901760
      %2223 = vmatprep.subr.mxu0 %v2222
      %v2224 = vand.u32 %v585, 4294901760
      %2225 = vmatpush1.msra.mxu0 %v2224
      %v2226 = vand.u32 %v588, 4294901760
      %2227 = vmatprep.subr.mxu0 %v2226
      %v2228 = vand.u32 %v587, 4294901760
      %2229 = vmatpush1.msra.mxu0 %v2228
      %v2230 = vand.u32 %v590, 4294901760
      %2231 = vmatprep.subr.mxu0 %v2230
      %v2232 = vand.u32 %v589, 4294901760
      %2233 = vmatpush1.msra.mxu0 %v2232
      %v2234 = vand.u32 %v592, 4294901760
      %2235 = vmatprep.subr.mxu0 %v2234
      %v2236 = vand.u32 %v591, 4294901760
      %2237 = vmatpush1.msra.mxu0 %v2236
      %v2238 = vand.u32 %v594, 4294901760
      %2239 = vmatprep.subr.mxu0 %v2238
      %v2240 = vand.u32 %v593, 4294901760
      %2241 = vmatpush1.msra.mxu0 %v2240
      %v2242 = vand.u32 %v596, 4294901760
      %2243 = vmatprep.subr.mxu0 %v2242
      %v2244 = vand.u32 %v595, 4294901760
      %2245 = vmatpush1.msra.mxu0 %v2244
      %v2246 = vand.u32 %v598, 4294901760
      %2247 = vmatprep.subr.mxu0 %v2246
      %v2248 = vand.u32 %v597, 4294901760
      %2249 = vmatpush1.msra.mxu0 %v2248
      %v2250 = vand.u32 %v600, 4294901760
      %2251 = vmatprep.subr.mxu0 %v2250
      %v2252 = vand.u32 %v599, 4294901760
      %2253 = vmatpush1.msra.mxu0 %v2252
      %v2254 = vand.u32 %v486, 4294901760
      %2255 = vmatprep.mubr.f32.mxu0 %v2254
      %v2256 = vand.u32 %v483, 4294901760
      %2257 = vmatmul.mubr.f32.gmra.mrb[0].mxu0 %v2256
      %v2258 = vpop.f32.mrb[0].mxu0
      %v2259 = vadd.f32 %v2066, %v2258
      %v2260 = vpop.f32.mrb[0].mxu0
      %v2261 = vadd.f32 %v2068, %v2260
      %v2262 = vand.u32 %v490, 4294901760
      %2263 = vmatprep.mubr.f32.mxu0 %v2262
      %v2264 = vand.u32 %v488, 4294901760
      %2265 = vmatmul.mubr.f32.gmra.mrb[0].mxu0 %v2264
      %v2266 = vpop.f32.mrb[0].mxu0
      %v2267 = vadd.f32 %v2074, %v2266
      %v2268 = vpop.f32.mrb[0].mxu0
      %v2269 = vadd.f32 %v2076, %v2268
      %v2270 = vand.u32 %v496, 4294901760
      %2271 = vmatprep.mubr.f32.mxu0 %v2270
      %v2272 = vand.u32 %v493, 4294901760
      %2273 = vmatmul.mubr.f32.gmra.mrb[0].mxu0 %v2272
      %v2274 = vpop.f32.mrb[0].mxu0
      %v2275 = vadd.f32 %v2082, %v2274
      %v2276 = vpop.f32.mrb[0].mxu0
      %v2277 = vadd.f32 %v2084, %v2276
      %v2278 = vand.u32 %v500, 4294901760
      %2279 = vmatprep.mubr.f32.mxu0 %v2278
      %v2280 = vand.u32 %v498, 4294901760
      %2281 = vmatmul.mubr.f32.gmra.mrb[0].mxu0 %v2280
      %v2282 = vpop.f32.mrb[0].mxu0
      %v2283 = vadd.f32 %v2090, %v2282
      %v2284 = vpop.f32.mrb[0].mxu0
      %v2285 = vadd.f32 %v2092, %v2284
      %v2286 = vand.u32 %v506, 4294901760
      %2287 = vmatprep.mubr.f32.mxu0 %v2286
      %v2288 = vand.u32 %v503, 4294901760
      %2289 = vmatmul.mubr.f32.gmra.mrb[0].mxu0 %v2288
      %v2290 = vpop.f32.mrb[0].mxu0
      %v2291 = vadd.f32 %v2098, %v2290
      %v2292 = vpop.f32.mrb[0].mxu0
      %v2293 = vadd.f32 %v2100, %v2292
      %v2294 = vand.u32 %v510, 4294901760
      %2295 = vmatprep.mubr.f32.mxu0 %v2294
      %v2296 = vand.u32 %v508, 4294901760
      %2297 = vmatmul.mubr.f32.gmra.mrb[0].mxu0 %v2296
      %v2298 = vpop.f32.mrb[0].mxu0
      %v2299 = vadd.f32 %v2106, %v2298
      %v2300 = vpop.f32.mrb[0].mxu0
      %v2301 = vadd.f32 %v2108, %v2300
      %v2302 = vand.u32 %v516, 4294901760
      %2303 = vmatprep.mubr.f32.mxu0 %v2302
      %v2304 = vand.u32 %v513, 4294901760
      %2305 = vmatmul.mubr.f32.gmra.mrb[0].mxu0 %v2304
      %v2306 = vpop.f32.mrb[0].mxu0
      %v2307 = vadd.f32 %v2114, %v2306
      %v2308 = vpop.f32.mrb[0].mxu0
      %v2309 = vadd.f32 %v2116, %v2308
      %v2310 = vand.u32 %v520, 4294901760
      %2311 = vmatprep.mubr.f32.mxu0 %v2310
      %v2312 = vand.u32 %v518, 4294901760
      %2313 = vmatmul.mubr.f32.gmra.mrb[0].mxu0 %v2312
      %v2314 = vpop.f32.mrb[0].mxu0
      %v2315 = vadd.f32 %v2122, %v2314
      %v2316 = vpop.f32.mrb[0].mxu0
      %v2317 = vadd.f32 %v2124, %v2316
      %2318 = vdwg.mxu0
      %s2319 = scalar_lea.vmem %s3, %s250
      %v2320 = vld [vmem:[%s2319] sm:$0x1]
      %v2321 = vld [vmem:[%s2319 + $0x1] sm:$0x1]
      %v2322 = vld [vmem:[%s2319 + $0x2] sm:$0x1]
      %v2323 = vld [vmem:[%s2319 + $0x3] sm:$0x1]
      %v2324 = vld [vmem:[%s4] sm:$0xff]
      %v2325 = vld [vmem:[%s4 + $0x8] sm:$0xff]
      %v2330 = vlaneseq
      %v2331 = vshrl.u32 %v2330, 7
      %v2332 = vsub.s32 0, %v2331
      %v2333 = vrot.slane %v2320, %v2332
      %v2334 = vlaneseq
      %v2335 = vshrl.u32 %v2334, 7
      %v2336 = vsub.s32 0, %v2335
      %v2337 = vrot.slane %v2321, %v2336
      %v2338 = vlaneseq
      %v2339 = vshrl.u32 %v2338, 7
      %v2340 = vsub.s32 0, %v2339
      %v2341 = vrot.slane %v2322, %v2340
      %v2342 = vlaneseq
      %v2343 = vshrl.u32 %v2342, 7
      %v2344 = vsub.s32 0, %v2343
      %v2345 = vrot.slane %v2323, %v2344
      %2346 = vset.pattern.permute.xlu0 0
      %2347 = vperm.xlu0 %2346, %v2333
      %v2348 = vpop.permute.xlu0 %2347
      %2350 = vset.pattern.permute.xlu0 0
      %2351 = vperm.xlu0 %2350, %v2337
      %v2352 = vpop.permute.xlu0 %2351
      %2354 = vset.pattern.permute.xlu0 0
      %2355 = vperm.xlu0 %2354, %v2341
      %v2356 = vpop.permute.xlu0 %2355
      %2358 = vset.pattern.permute.xlu0 0
      %2359 = vperm.xlu0 %2358, %v2345
      %v2360 = vpop.permute.xlu0 %2359
      %v2362 = vmul.f32 %v2348, %v253
      %v2363 = vmul.f32 %v2348, %v254
      %v2364 = vmul.f32 %v2348, %v255
      %v2365 = vmul.f32 %v2352, %v256
      %v2366 = vmul.f32 %v2352, %v257
      %v2367 = vmul.f32 %v2352, %v258
      %v2368 = vmul.f32 %v2356, %v259
      %v2369 = vmul.f32 %v2356, %v260
      %v2370 = vmul.f32 %v2356, %v261
      %v2371 = vmul.f32 %v2360, %v262
      %v2372 = vmul.f32 %v2360, %v263
      %v2373 = vmul.f32 %v2360, %v264
      %2374 = vset.pattern.permute.xlu0 1
      %2375 = vperm.xlu0 %2374, %v2333
      %v2376 = vpop.permute.xlu0 %2375
      %2378 = vset.pattern.permute.xlu0 1
      %2379 = vperm.xlu0 %2378, %v2337
      %v2380 = vpop.permute.xlu0 %2379
      %2382 = vset.pattern.permute.xlu0 1
      %2383 = vperm.xlu0 %2382, %v2341
      %v2384 = vpop.permute.xlu0 %2383
      %2386 = vset.pattern.permute.xlu0 1
      %2387 = vperm.xlu0 %2386, %v2345
      %v2388 = vpop.permute.xlu0 %2387
      %v2390 = vmul.f32 %v2376, %v268
      %v2391 = vmul.f32 %v2376, %v269
      %v2392 = vmul.f32 %v2376, %v270
      %v2393 = vmul.f32 %v2380, %v271
      %v2394 = vmul.f32 %v2380, %v272
      %v2395 = vmul.f32 %v2380, %v273
      %v2396 = vmul.f32 %v2384, %v274
      %v2397 = vmul.f32 %v2384, %v275
      %v2398 = vmul.f32 %v2384, %v276
      %v2399 = vmul.f32 %v2388, %v277
      %v2400 = vmul.f32 %v2388, %v278
      %v2401 = vmul.f32 %v2388, %v279
      %v2402 = vadd.f32 %v2362, %v2390
      %v2403 = vadd.f32 %v2363, %v2391
      %v2404 = vadd.f32 %v2364, %v2392
      %v2405 = vadd.f32 %v2365, %v2393
      %v2406 = vadd.f32 %v2366, %v2394
      %v2407 = vadd.f32 %v2367, %v2395
      %v2408 = vadd.f32 %v2368, %v2396
      %v2409 = vadd.f32 %v2369, %v2397
      %v2410 = vadd.f32 %v2370, %v2398
      %v2411 = vadd.f32 %v2371, %v2399
      %v2412 = vadd.f32 %v2372, %v2400
      %v2413 = vadd.f32 %v2373, %v2401
      %2414 = vset.pattern.permute.xlu0 2
      %2415 = vperm.xlu0 %2414, %v2333
      %v2416 = vpop.permute.xlu0 %2415
      %2418 = vset.pattern.permute.xlu0 2
      %2419 = vperm.xlu0 %2418, %v2337
      %v2420 = vpop.permute.xlu0 %2419
      %2422 = vset.pattern.permute.xlu0 2
      %2423 = vperm.xlu0 %2422, %v2341
      %v2424 = vpop.permute.xlu0 %2423
      %2426 = vset.pattern.permute.xlu0 2
      %2427 = vperm.xlu0 %2426, %v2345
      %v2428 = vpop.permute.xlu0 %2427
      %v2430 = vmul.f32 %v2416, %v268
      %v2431 = vmul.f32 %v2416, %v269
      %v2432 = vmul.f32 %v2416, %v270
      %v2433 = vmul.f32 %v2420, %v271
      %v2434 = vmul.f32 %v2420, %v272
      %v2435 = vmul.f32 %v2420, %v273
      %v2436 = vmul.f32 %v2424, %v274
      %v2437 = vmul.f32 %v2424, %v275
      %v2438 = vmul.f32 %v2424, %v276
      %v2439 = vmul.f32 %v2428, %v277
      %v2440 = vmul.f32 %v2428, %v278
      %v2441 = vmul.f32 %v2428, %v279
      %2442 = vset.pattern.permute.xlu0 3
      %2443 = vperm.xlu0 %2442, %v2333
      %v2444 = vpop.permute.xlu0 %2443
      %2446 = vset.pattern.permute.xlu0 3
      %2447 = vperm.xlu0 %2446, %v2337
      %v2448 = vpop.permute.xlu0 %2447
      %2450 = vset.pattern.permute.xlu0 3
      %2451 = vperm.xlu0 %2450, %v2341
      %v2452 = vpop.permute.xlu0 %2451
      %2454 = vset.pattern.permute.xlu0 3
      %2455 = vperm.xlu0 %2454, %v2345
      %v2456 = vpop.permute.xlu0 %2455
      %v2458 = vmul.f32 %v2444, %v283
      %v2459 = vmul.f32 %v2444, %v284
      %v2460 = vmul.f32 %v2444, %v285
      %v2461 = vmul.f32 %v2448, %v286
      %v2462 = vmul.f32 %v2448, %v287
      %v2463 = vmul.f32 %v2448, %v288
      %v2464 = vmul.f32 %v2452, %v289
      %v2465 = vmul.f32 %v2452, %v290
      %v2466 = vmul.f32 %v2452, %v291
      %v2467 = vmul.f32 %v2456, %v292
      %v2468 = vmul.f32 %v2456, %v293
      %v2469 = vmul.f32 %v2456, %v294
      %v2470 = vadd.f32 %v2430, %v2458
      %v2471 = vadd.f32 %v2431, %v2459
      %v2472 = vadd.f32 %v2432, %v2460
      %v2473 = vadd.f32 %v2433, %v2461
      %v2474 = vadd.f32 %v2434, %v2462
      %v2475 = vadd.f32 %v2435, %v2463
      %v2476 = vadd.f32 %v2436, %v2464
      %v2477 = vadd.f32 %v2437, %v2465
      %v2478 = vadd.f32 %v2438, %v2466
      %v2479 = vadd.f32 %v2439, %v2467
      %v2480 = vadd.f32 %v2440, %v2468
      %v2481 = vadd.f32 %v2441, %v2469
      %v2482 = vld [vmem:[%s2] sm:$0x1]
      %2484 = vset.pattern.permute.xlu0 0
      %2485 = vperm.xlu0 %2484, %v2324
      %v2486 = vpop.permute.xlu0 %2485
      %2489 = vset.pattern.permute.xlu0 0
      %2490 = vperm.xlu0 %2489, %v2325
      %v2491 = vpop.permute.xlu0 %2490
      %v2493 = vmul.f32 %v2486, %v2402
      %v2494 = vmul.f32 %v2491, %v2403
      %v2495 = vmul.f32 %v2486, %v2405
      %v2496 = vmul.f32 %v2491, %v2406
      %v2497 = vmul.f32 %v2486, %v2408
      %v2498 = vmul.f32 %v2491, %v2409
      %v2499 = vmul.f32 %v2486, %v2411
      %v2500 = vmul.f32 %v2491, %v2412
      %2501 = vset.pattern.permute.xlu0 1
      %2502 = vperm.xlu0 %2501, %v2324
      %v2503 = vpop.permute.xlu0 %2502
      %2505 = vset.pattern.permute.xlu0 1
      %2506 = vperm.xlu0 %2505, %v2325
      %v2507 = vpop.permute.xlu0 %2506
      %v2521 = vrot.slane %v2402, 1
      %v2522 = vrot.slane %v2403, 1
      %v2523 = vsel %vm307, %v2521, %v2522
      %v2524 = vrot.slane %v2404, 1
      %v2525 = vsel %vm307, %v2522, %v2524
      %v2526 = vrot.slane %v2405, 1
      %v2527 = vrot.slane %v2406, 1
      %v2528 = vsel %vm307, %v2526, %v2527
      %v2529 = vrot.slane %v2407, 1
      %v2530 = vsel %vm307, %v2527, %v2529
      %v2531 = vrot.slane %v2408, 1
      %v2532 = vrot.slane %v2409, 1
      %v2533 = vsel %vm307, %v2531, %v2532
      %v2534 = vrot.slane %v2410, 1
      %v2535 = vsel %vm307, %v2532, %v2534
      %v2536 = vrot.slane %v2411, 1
      %v2537 = vrot.slane %v2412, 1
      %v2538 = vsel %vm307, %v2536, %v2537
      %v2539 = vrot.slane %v2413, 1
      %v2540 = vsel %vm307, %v2537, %v2539
      %v2549 = vmul.f32 %v2503, %v2523
      %v2550 = vmul.f32 %v2507, %v2525
      %v2551 = vmul.f32 %v2503, %v2528
      %v2552 = vmul.f32 %v2507, %v2530
      %v2553 = vmul.f32 %v2503, %v2533
      %v2554 = vmul.f32 %v2507, %v2535
      %v2555 = vmul.f32 %v2503, %v2538
      %v2556 = vmul.f32 %v2507, %v2540
      %v2557 = vadd.f32 %v2493, %v2549
      %v2558 = vadd.f32 %v2494, %v2550
      %v2559 = vadd.f32 %v2495, %v2551
      %v2560 = vadd.f32 %v2496, %v2552
      %v2561 = vadd.f32 %v2497, %v2553
      %v2562 = vadd.f32 %v2498, %v2554
      %v2563 = vadd.f32 %v2499, %v2555
      %v2564 = vadd.f32 %v2500, %v2556
      %2565 = vset.pattern.permute.xlu0 2
      %2566 = vperm.xlu0 %2565, %v2324
      %v2567 = vpop.permute.xlu0 %2566
      %2569 = vset.pattern.permute.xlu0 2
      %2570 = vperm.xlu0 %2569, %v2325
      %v2571 = vpop.permute.xlu0 %2570
      %v2573 = vmul.f32 %v2567, %v2523
      %v2574 = vmul.f32 %v2571, %v2525
      %v2575 = vmul.f32 %v2567, %v2528
      %v2576 = vmul.f32 %v2571, %v2530
      %v2577 = vmul.f32 %v2567, %v2533
      %v2578 = vmul.f32 %v2571, %v2535
      %v2579 = vmul.f32 %v2567, %v2538
      %v2580 = vmul.f32 %v2571, %v2540
      %2581 = vset.pattern.permute.xlu0 3
      %2582 = vperm.xlu0 %2581, %v2324
      %v2583 = vpop.permute.xlu0 %2582
      %2585 = vset.pattern.permute.xlu0 3
      %2586 = vperm.xlu0 %2585, %v2325
      %v2587 = vpop.permute.xlu0 %2586
      %vm2589 = vcmask 1045504
      %v2590 = vrot.slane %v2402, 2
      %v2591 = vrot.slane %v2403, 2
      %v2592 = vsel %vm2589, %v2590, %v2591
      %v2593 = vrot.slane %v2404, 2
      %v2594 = vsel %vm2589, %v2591, %v2593
      %v2595 = vrot.slane %v2405, 2
      %v2596 = vrot.slane %v2406, 2
      %v2597 = vsel %vm2589, %v2595, %v2596
      %v2598 = vrot.slane %v2407, 2
      %v2599 = vsel %vm2589, %v2596, %v2598
      %v2600 = vrot.slane %v2408, 2
      %v2601 = vrot.slane %v2409, 2
      %v2602 = vsel %vm2589, %v2600, %v2601
      %v2603 = vrot.slane %v2410, 2
      %v2604 = vsel %vm2589, %v2601, %v2603
      %v2605 = vrot.slane %v2411, 2
      %v2606 = vrot.slane %v2412, 2
      %v2607 = vsel %vm2589, %v2605, %v2606
      %v2608 = vrot.slane %v2413, 2
      %v2609 = vsel %vm2589, %v2606, %v2608
      %v2618 = vmul.f32 %v2583, %v2592
      %v2619 = vmul.f32 %v2587, %v2594
      %v2620 = vmul.f32 %v2583, %v2597
      %v2621 = vmul.f32 %v2587, %v2599
      %v2622 = vmul.f32 %v2583, %v2602
      %v2623 = vmul.f32 %v2587, %v2604
      %v2624 = vmul.f32 %v2583, %v2607
      %v2625 = vmul.f32 %v2587, %v2609
      %v2626 = vadd.f32 %v2573, %v2618
      %v2627 = vadd.f32 %v2574, %v2619
      %v2628 = vadd.f32 %v2575, %v2620
      %v2629 = vadd.f32 %v2576, %v2621
      %v2630 = vadd.f32 %v2577, %v2622
      %v2631 = vadd.f32 %v2578, %v2623
      %v2632 = vadd.f32 %v2579, %v2624
      %v2633 = vadd.f32 %v2580, %v2625
      %2642 = vrot.lane.b32.xlu0 %v2626, 64
      %v2643 = vpop.permute.xlu0 %2642
      %2644 = vrot.lane.b32.xlu0 %v2627, 64
      %v2645 = vpop.permute.xlu0 %2644
      %2646 = vrot.lane.b32.xlu0 %v2628, 64
      %v2647 = vpop.permute.xlu0 %2646
      %2648 = vrot.lane.b32.xlu0 %v2629, 64
      %v2649 = vpop.permute.xlu0 %2648
      %2650 = vrot.lane.b32.xlu0 %v2630, 64
      %v2651 = vpop.permute.xlu0 %2650
      %2652 = vrot.lane.b32.xlu0 %v2631, 64
      %v2653 = vpop.permute.xlu0 %2652
      %2654 = vrot.lane.b32.xlu0 %v2632, 64
      %v2655 = vpop.permute.xlu0 %2654
      %2656 = vrot.lane.b32.xlu0 %v2633, 64
      %v2657 = vpop.permute.xlu0 %2656
      %v2666 = vsel %vm432, %v2557, %v2643
      %v2667 = vsel %vm432, %v2558, %v2645
      %v2668 = vsel %vm432, %v2559, %v2647
      %v2669 = vsel %vm432, %v2560, %v2649
      %v2670 = vsel %vm432, %v2561, %v2651
      %v2671 = vsel %vm432, %v2562, %v2653
      %v2672 = vsel %vm432, %v2563, %v2655
      %v2673 = vsel %vm432, %v2564, %v2657
      %v2674 = vadd.f32 %v2259, %v2666
      %v2675 = vadd.f32 %v2267, %v2667
      %v2676 = vadd.f32 %v2275, %v2668
      %v2677 = vadd.f32 %v2283, %v2669
      %v2678 = vadd.f32 %v2291, %v2670
      %v2679 = vadd.f32 %v2299, %v2671
      %v2680 = vadd.f32 %v2307, %v2672
      %v2681 = vadd.f32 %v2315, %v2673
      %v2683 = vlaneseq
      %v2684 = vshrl.u32 %v2683, 7
      %v2685 = vsub.s32 0, %v2684
      %v2686 = vrot.slane %v2482, %v2685
      %v2688 = vadd.f32 %v2674, %v2686
      %v2689 = vadd.f32 %v2675, %v2686
      %v2690 = vadd.f32 %v2676, %v2686
      %v2691 = vadd.f32 %v2677, %v2686
      %v2692 = vadd.f32 %v2678, %v2686
      %v2693 = vadd.f32 %v2679, %v2686
      %v2694 = vadd.f32 %v2680, %v2686
      %v2695 = vadd.f32 %v2681, %v2686
      %v2696 = vmax.f32 %v2688, 0.0
      %v2697 = vmax.f32 %v2689, 0.0
      %v2698 = vmax.f32 %v2690, 0.0
      %v2699 = vmax.f32 %v2691, 0.0
      %v2700 = vmax.f32 %v2692, 0.0
      %v2701 = vmax.f32 %v2693, 0.0
      %v2702 = vmax.f32 %v2694, 0.0
      %v2703 = vmax.f32 %v2695, 0.0
      %2704 = vst [vmem:[%s248] sm:$0xff] %v2696
      %2705 = vst [vmem:[%s248 + $0x8] sm:$0xff] %v2697
      %2706 = vst [vmem:[%s248 + $0x20] sm:$0xff] %v2698
      %2707 = vst [vmem:[%s248 + $0x28] sm:$0xff] %v2699
      %2708 = vst [vmem:[%s248 + $0x40] sm:$0xff] %v2700
      %2709 = vst [vmem:[%s248 + $0x48] sm:$0xff] %v2701
      %2710 = vst [vmem:[%s248 + $0x60] sm:$0xff] %v2702
      %2711 = vst [vmem:[%s248 + $0x68] sm:$0xff] %v2703
      %v2712 = vmul.f32 %v2486, %v2470
      %v2713 = vmul.f32 %v2491, %v2471
      %v2714 = vmul.f32 %v2486, %v2473
      %v2715 = vmul.f32 %v2491, %v2474
      %v2716 = vmul.f32 %v2486, %v2476
      %v2717 = vmul.f32 %v2491, %v2477
      %v2718 = vmul.f32 %v2486, %v2479
      %v2719 = vmul.f32 %v2491, %v2480
      %v2732 = vrot.slane %v2470, 1
      %v2733 = vrot.slane %v2471, 1
      %v2734 = vsel %vm307, %v2732, %v2733
      %v2735 = vrot.slane %v2472, 1
      %v2736 = vsel %vm307, %v2733, %v2735
      %v2737 = vrot.slane %v2473, 1
      %v2738 = vrot.slane %v2474, 1
      %v2739 = vsel %vm307, %v2737, %v2738
      %v2740 = vrot.slane %v2475, 1
      %v2741 = vsel %vm307, %v2738, %v2740
      %v2742 = vrot.slane %v2476, 1
      %v2743 = vrot.slane %v2477, 1
      %v2744 = vsel %vm307, %v2742, %v2743
      %v2745 = vrot.slane %v2478, 1
      %v2746 = vsel %vm307, %v2743, %v2745
      %v2747 = vrot.slane %v2479, 1
      %v2748 = vrot.slane %v2480, 1
      %v2749 = vsel %vm307, %v2747, %v2748
      %v2750 = vrot.slane %v2481, 1
      %v2751 = vsel %vm307, %v2748, %v2750
      %v2760 = vmul.f32 %v2503, %v2734
      %v2761 = vmul.f32 %v2507, %v2736
      %v2762 = vmul.f32 %v2503, %v2739
      %v2763 = vmul.f32 %v2507, %v2741
      %v2764 = vmul.f32 %v2503, %v2744
      %v2765 = vmul.f32 %v2507, %v2746
      %v2766 = vmul.f32 %v2503, %v2749
      %v2767 = vmul.f32 %v2507, %v2751
      %v2768 = vadd.f32 %v2712, %v2760
      %v2769 = vadd.f32 %v2713, %v2761
      %v2770 = vadd.f32 %v2714, %v2762
      %v2771 = vadd.f32 %v2715, %v2763
      %v2772 = vadd.f32 %v2716, %v2764
      %v2773 = vadd.f32 %v2717, %v2765
      %v2774 = vadd.f32 %v2718, %v2766
      %v2775 = vadd.f32 %v2719, %v2767
      %v2776 = vmul.f32 %v2567, %v2734
      %v2777 = vmul.f32 %v2571, %v2736
      %v2778 = vmul.f32 %v2567, %v2739
      %v2779 = vmul.f32 %v2571, %v2741
      %v2780 = vmul.f32 %v2567, %v2744
      %v2781 = vmul.f32 %v2571, %v2746
      %v2782 = vmul.f32 %v2567, %v2749
      %v2783 = vmul.f32 %v2571, %v2751
      %v2784 = vrot.slane %v2470, 2
      %v2785 = vrot.slane %v2471, 2
      %v2786 = vsel %vm2589, %v2784, %v2785
      %v2787 = vrot.slane %v2472, 2
      %v2788 = vsel %vm2589, %v2785, %v2787
      %v2789 = vrot.slane %v2473, 2
      %v2790 = vrot.slane %v2474, 2
      %v2791 = vsel %vm2589, %v2789, %v2790
      %v2792 = vrot.slane %v2475, 2
      %v2793 = vsel %vm2589, %v2790, %v2792
      %v2794 = vrot.slane %v2476, 2
      %v2795 = vrot.slane %v2477, 2
      %v2796 = vsel %vm2589, %v2794, %v2795
      %v2797 = vrot.slane %v2478, 2
      %v2798 = vsel %vm2589, %v2795, %v2797
      %v2799 = vrot.slane %v2479, 2
      %v2800 = vrot.slane %v2480, 2
      %v2801 = vsel %vm2589, %v2799, %v2800
      %v2802 = vrot.slane %v2481, 2
      %v2803 = vsel %vm2589, %v2800, %v2802
      %v2812 = vmul.f32 %v2583, %v2786
      %v2813 = vmul.f32 %v2587, %v2788
      %v2814 = vmul.f32 %v2583, %v2791
      %v2815 = vmul.f32 %v2587, %v2793
      %v2816 = vmul.f32 %v2583, %v2796
      %v2817 = vmul.f32 %v2587, %v2798
      %v2818 = vmul.f32 %v2583, %v2801
      %v2819 = vmul.f32 %v2587, %v2803
      %v2820 = vadd.f32 %v2776, %v2812
      %v2821 = vadd.f32 %v2777, %v2813
      %v2822 = vadd.f32 %v2778, %v2814
      %v2823 = vadd.f32 %v2779, %v2815
      %v2824 = vadd.f32 %v2780, %v2816
      %v2825 = vadd.f32 %v2781, %v2817
      %v2826 = vadd.f32 %v2782, %v2818
      %v2827 = vadd.f32 %v2783, %v2819
      %2836 = vrot.lane.b32.xlu0 %v2820, 64
      %v2837 = vpop.permute.xlu0 %2836
      %2838 = vrot.lane.b32.xlu0 %v2821, 64
      %v2839 = vpop.permute.xlu0 %2838
      %2840 = vrot.lane.b32.xlu0 %v2822, 64
      %v2841 = vpop.permute.xlu0 %2840
      %2842 = vrot.lane.b32.xlu0 %v2823, 64
      %v2843 = vpop.permute.xlu0 %2842
      %2844 = vrot.lane.b32.xlu0 %v2824, 64
      %v2845 = vpop.permute.xlu0 %2844
      %2846 = vrot.lane.b32.xlu0 %v2825, 64
      %v2847 = vpop.permute.xlu0 %2846
      %2848 = vrot.lane.b32.xlu0 %v2826, 64
      %v2849 = vpop.permute.xlu0 %2848
      %2850 = vrot.lane.b32.xlu0 %v2827, 64
      %v2851 = vpop.permute.xlu0 %2850
      %v2860 = vsel %vm432, %v2768, %v2837
      %v2861 = vsel %vm432, %v2769, %v2839
      %v2862 = vsel %vm432, %v2770, %v2841
      %v2863 = vsel %vm432, %v2771, %v2843
      %v2864 = vsel %vm432, %v2772, %v2845
      %v2865 = vsel %vm432, %v2773, %v2847
      %v2866 = vsel %vm432, %v2774, %v2849
      %v2867 = vsel %vm432, %v2775, %v2851
      %v2868 = vadd.f32 %v2261, %v2860
      %v2869 = vadd.f32 %v2269, %v2861
      %v2870 = vadd.f32 %v2277, %v2862
      %v2871 = vadd.f32 %v2285, %v2863
      %v2872 = vadd.f32 %v2293, %v2864
      %v2873 = vadd.f32 %v2301, %v2865
      %v2874 = vadd.f32 %v2309, %v2866
      %v2875 = vadd.f32 %v2317, %v2867
      %v2876 = vadd.f32 %v2868, %v2686
      %v2877 = vadd.f32 %v2869, %v2686
      %v2878 = vadd.f32 %v2870, %v2686
      %v2879 = vadd.f32 %v2871, %v2686
      %v2880 = vadd.f32 %v2872, %v2686
      %v2881 = vadd.f32 %v2873, %v2686
      %v2882 = vadd.f32 %v2874, %v2686
      %v2883 = vadd.f32 %v2875, %v2686
      %v2884 = vmax.f32 %v2876, 0.0
      %v2885 = vmax.f32 %v2877, 0.0
      %v2886 = vmax.f32 %v2878, 0.0
      %v2887 = vmax.f32 %v2879, 0.0
      %v2888 = vmax.f32 %v2880, 0.0
      %v2889 = vmax.f32 %v2881, 0.0
      %v2890 = vmax.f32 %v2882, 0.0
      %v2891 = vmax.f32 %v2883, 0.0
      %s2892 = scalar_lea.vmem %s248, 16
      %2893 = vst [vmem:[%s2892] sm:$0xff] %v2884
      %2894 = vst [vmem:[%s2892 + $0x8] sm:$0xff] %v2885
      %2895 = vst [vmem:[%s2892 + $0x20] sm:$0xff] %v2886
      %2896 = vst [vmem:[%s2892 + $0x28] sm:$0xff] %v2887
      %2897 = vst [vmem:[%s2892 + $0x40] sm:$0xff] %v2888
      %2898 = vst [vmem:[%s2892 + $0x48] sm:$0xff] %v2889
      %2899 = vst [vmem:[%s2892 + $0x60] sm:$0xff] %v2890
      %2900 = vst [vmem:[%s2892 + $0x68] sm:$0xff] %v2891
      %s2901 = smul.u32 4, %s21
      %p2902 = scmp.lt.s32.totalorder %s20, 1
      %s2903 = scalar_select %p2902, %s20, 1
      %p2904 = scmp.lt.s32.totalorder %s2901, 15
      %s2905 = scalar_select %p2904, %s2901, 15
      %s2906 = smul.addr %s2905, 4
      %s2907 = smul.addr %s2903, 64
      %s2908 = sadd.s32 %s2906, %s2907
      %s2909 = smul.addr %s2908, 8
      %s2910 = scalar_lea.vmem %s5, %s2909
      // Predicated region
      $region41: #{rep_upsample_forward.1} parent=39 // pred_check
        %p2911 = pneg %p158
      $region42: #{rep_upsample_forward.1} parent=39 // pred_check_branch
        %2913 = sbr.rel (%p2911) target = $region44
      $region43: #{rep_upsample_forward.1} parent=39 // pred_region
        %s2914 = smul.u32 4, %s21
      $region44: #{rep_upsample_forward.1} parent=39 // pred_fallthru
        _
    $region40: #{rep_upsample_forward.1} parent=5 // pred_fallthru
      _
    %p2915 = scmp.le.s32.totalorder 2, %s11
    // Predicated region
    $region45: #{rep_upsample_forward.1} parent=5 // pred_check
      %p2916 = pneg %p2915
    $region46: #{rep_upsample_forward.1} parent=5 // pred_check_branch
      %2918 = sbr.rel (%p2916) target = $region48
    $region47: #{rep_upsample_forward.1} parent=5 // pred_region
      %s2919 = ssub.s32 %s11, 2
      // Predicated region
      $region49: #{rep_upsample_forward.1} parent=47 // pred_check
        %p2920 = pneg %p164
      $region50: #{rep_upsample_forward.1} parent=47 // pred_check_branch
        %2922 = sbr.rel (%p2920) target = $region52
      $region51: #{rep_upsample_forward.1} parent=47 // pred_region
        %s2923 = smul.u32 4, %s23
        %p2924 = scmp.lt.s32.totalorder %s22, 1
        %s2925 = scalar_select %p2924, %s22, 1
        %p2926 = scmp.lt.s32.totalorder %s2923, 15
        %s2927 = scalar_select %p2926, %s2923, 15
        %s2928 = smul.addr %s2927, 4
        %s2929 = smul.addr %s2925, 64
        %s2930 = sadd.s32 %s2928, %s2929
        %s2931 = smul.addr %s2930, 8
        %s2932 = scalar_lea.vmem %s5, %s2931
      $region52: #{rep_upsample_forward.1} parent=47 // pred_fallthru
        _
    $region48: #{rep_upsample_forward.1} parent=5 // pred_fallthru
      _
  $region6: #{rep_upsample_forward.1} parent=0 // loop_footer
    %s15 = sadd.s32 1, %s11
  $region7: #{rep_upsample_forward.1} parent=0 // loop_footer_branch
    %10 = sbr.rel target = $region3
  $region8: #{rep_upsample_forward.1} parent=0 // loop_exit
    _

</llo_original>
